<compile_context>
chip_gen: v5e
topology: v5e:2x2
jax: 0.10.0
libtpu: 0.0.40
codegen_flags: <defaults>
</compile_context>

<pallas_src>
import math

import jax
import jax.numpy as jnp
from jax import lax
from jax.experimental import pallas as pl
from jax.experimental.pallas import tpu as pltpu


# --------------------------------------------------------------------------
# Pallas kernel (factory closes over the static shape/config)
# --------------------------------------------------------------------------
def _full_spec(shape):
    nd = len(shape)
    return pl.BlockSpec(shape, lambda *_: (0,) * nd)


def make_rnn_block_kernel(S, B, D, H, num_layers, num_dirs):
    H3 = 3 * H

    def kernel(*refs):
        x_ref = refs[0]
        n_w = num_layers * 4
        w_refs = refs[1:1 + n_w]
        out_ref = refs[1 + n_w]
        scratch = refs[2 + n_w:]
        gi_refs = scratch[:num_dirs]                 # per-direction (S, B, 3H)
        act_refs = scratch[num_dirs:2 * num_dirs]    # per-direction (S, B, H)

        for layer in range(num_layers):
            wi_ref, wh_ref, bgi_ref, bhn_ref = w_refs[4 * layer:4 * layer + 4]

            # ---- hoisted bulk input projection: ONE fused dot for both dirs.
            # b_ir/b_iz/b_in and b_hr/b_hz are already folded into bgi.
            bgi = bgi_ref[...]                               # (1, nd*3H) f32
            wi = wi_ref[...]                                 # (Din, nd*3H) f32
            if layer == 0:
                x2d = x_ref[...].reshape(S * B, D)
                gi_full = jnp.dot(x2d, wi,
                                  preferred_element_type=jnp.float32) + bgi
            elif num_dirs == 1:
                x2d = act_refs[0][...].reshape(S * B, H)
                gi_full = jnp.dot(x2d, wi,
                                  preferred_element_type=jnp.float32) + bgi
            else:
                # K-split dot instead of lane-axis concat of the two directions.
                x0 = act_refs[0][...].reshape(S * B, H)
                x1 = act_refs[1][...].reshape(S * B, H)
                gi_full = (jnp.dot(x0, wi[:H],
                                   preferred_element_type=jnp.float32)
                           + jnp.dot(x1, wi[H:2 * H],
                                     preferred_element_type=jnp.float32)
                           + bgi)
            for d in range(num_dirs):
                gi_refs[d][...] = gi_full[:, d * H3:(d + 1) * H3].reshape(S, B, H3)

            # ---- recurrence: one fused loop, both directions in ONE body so
            #      their independent h @ Wh chains overlap on the MXU.
            wh = wh_ref[...]                                 # (H, nd*3H) bf16
            whs = [wh[:, d * H3:(d + 1) * H3] for d in range(num_dirs)]
            bhn = bhn_ref[...]                               # (1, nd*H) f32
            bhns = [bhn[:, d * H:(d + 1) * H] for d in range(num_dirs)]

            def step(t, carry):
                new = []
                for d in range(num_dirs):
                    h = carry[d]
                    tt = (S - 1 - t) if d == 1 else t
                    g = gi_refs[d][tt]                       # (B, 3H), r/z biases folded
                    gh = jnp.dot(h.astype(jnp.bfloat16), whs[d],
                                 preferred_element_type=jnp.float32)
                    rz = jax.nn.sigmoid(g[:, :2 * H] + gh[:, :2 * H])
                    r = rz[:, :H]
                    z = rz[:, H:]
                    n = jnp.tanh(g[:, 2 * H:] + r * (gh[:, 2 * H:] + bhns[d]))
                    h_new = n + z * (h - n)                  # == (1-z)*n + z*h
                    act_refs[d][tt] = h_new
                    new.append(h_new)
                return tuple(new)

            carry0 = tuple(jnp.zeros((B, H), jnp.float32)
                           for _ in range(num_dirs))
            unroll = True if S <= 32 else 8
            lax.fori_loop(0, S, step, carry0, unroll=unroll)

        # ---- fused mean over batch: strided writes, no lane-axis concat.
        for d in range(num_dirs):
            out_ref[:, d * H:(d + 1) * H] = jnp.mean(act_refs[d][...], axis=1)

    return kernel


# --------------------------------------------------------------------------
# Wrapper: host-side weight packing (gate+direction concat, bias folding,
# bf16 cast of the recurrent weights) + pallas_call
# --------------------------------------------------------------------------
def rnn_block_forward(x, params, hidden_size, num_layers, bidirectional):
    """x: (seq_len, BN, input_size) -> (seq_len, num_directions*hidden_size)."""
    S, B, D = x.shape
    H = hidden_size
    num_dirs = 2 if bidirectional else 1

    flat_w = []
    in_specs = [_full_spec((S, B, D))]
    for layer in range(num_layers):
        dirs = params[layer]
        # wi: (Din, nd*3H) f32 (bulk projection stays f32, off critical path)
        wi_cat = jnp.concatenate([p[0] for p in dirs], axis=1)
        # wh: (H, nd*3H) bf16 (serial-path MXU operand)
        wh_cat = jnp.concatenate([p[1] for p in dirs], axis=1).astype(jnp.bfloat16)
        # folded input bias: bi + [bh_r, bh_z, 0]  -> (1, nd*3H)
        bgi_cat = jnp.concatenate(
            [p[2] + jnp.concatenate(
                [p[3][:, :2 * H], jnp.zeros((1, H), p[3].dtype)], axis=1)
             for p in dirs], axis=1)
        # remaining recurrent bias for the n gate: (1, nd*H)
        bhn_cat = jnp.concatenate([p[3][:, 2 * H:] for p in dirs], axis=1)

        flat_w += [wi_cat, wh_cat, bgi_cat, bhn_cat]
        in_specs += [_full_spec(wi_cat.shape), _full_spec(wh_cat.shape),
                     _full_spec(bgi_cat.shape), _full_spec(bhn_cat.shape)]

    kernel = make_rnn_block_kernel(S, B, D, H, num_layers, num_dirs)

    scratch_shapes = (
        [pltpu.VMEM((S, B, 3 * H), jnp.float32) for _ in range(num_dirs)] +
        [pltpu.VMEM((S, B, H), jnp.float32) for _ in range(num_dirs)]
    )

    return pl.pallas_call(
        kernel,
        out_shape=jax.ShapeDtypeStruct((S, num_dirs * H), jnp.float32),
        in_specs=in_specs,
        out_specs=_full_spec((S, num_dirs * H)),
        scratch_shapes=scratch_shapes,
    )(x, *flat_w)


# --------------------------------------------------------------------------
# Parameter init (PyTorch GRU: U(-1/sqrt(H), 1/sqrt(H))), gate-concatenated:
#   wi: (Din, 3H), wh: (H, 3H), bi/bh: (1, 3H)  with columns ordered [r|z|n]
# --------------------------------------------------------------------------
def init_gru_params(key, input_size, hidden_size, num_layers, bidirectional):
    num_dirs = 2 if bidirectional else 1
    k = 1.0 / math.sqrt(hidden_size)
    params = []
    for layer in range(num_layers):
        layer_in = input_size if layer == 0 else hidden_size * num_dirs
        dir_params = []
        for _ in range(num_dirs):
            key, k1, k2, k3, k4 = jax.random.split(key, 5)
            wi = jax.random.uniform(k1, (layer_in, 3 * hidden_size),
                                    minval=-k, maxval=k, dtype=jnp.float32)
            wh = jax.random.uniform(k2, (hidden_size, 3 * hidden_size),
                                    minval=-k, maxval=k, dtype=jnp.float32)
            bi = jax.random.uniform(k3, (1, 3 * hidden_size),
                                    minval=-k, maxval=k, dtype=jnp.float32)
            bh = jax.random.uniform(k4, (1, 3 * hidden_size),
                                    minval=-k, maxval=k, dtype=jnp.float32)
            dir_params.append((wi, wh, bi, bh))
        params.append(dir_params)
    return params


# --------------------------------------------------------------------------
# Pure-JAX f32 reference (same math as the PyTorch module) for correctness
# --------------------------------------------------------------------------
def rnn_block_reference(x, params, hidden_size):
    H = hidden_size
    B = x.shape[1]
    h = x
    for layer_params in params:
        outs = []
        for d, (wi, wh, bi, bh) in enumerate(layer_params):
            xin = h if d == 0 else jnp.flip(h, axis=0)

            def step(hprev, x_t, wi=wi, wh=wh, bi=bi, bh=bh):
                gi = x_t @ wi + bi
                gh = hprev @ wh + bh
                r = jax.nn.sigmoid(gi[:, :H] + gh[:, :H])
                z = jax.nn.sigmoid(gi[:, H:2 * H] + gh[:, H:2 * H])
                n = jnp.tanh(gi[:, 2 * H:] + r * gh[:, 2 * H:])
                hn = (1.0 - z) * n + z * hprev
                return hn, hn

            h0 = jnp.zeros((B, H), jnp.float32)
            _, ys = lax.scan(step, h0, xin)
            if d == 1:
                ys = jnp.flip(ys, axis=0)
            outs.append(ys)
        h = outs[0] if len(outs) == 1 else jnp.concatenate(outs, axis=-1)
    return jnp.mean(h, axis=1)


# --------------------------------------------------------------------------
# Demo
# --------------------------------------------------------------------------
if __name__ == "__main__":
    SEQ_LEN = 8
    BATCH = 8
    INPUT_SIZE = 3 * 64          # fixed by the module (192)
    HIDDEN_SIZE = 32
    NUM_LAYERS = 2

    key = jax.random.PRNGKey(0)
    kx, kp1, kp2 = jax.random.split(key, 3)
    x = jax.random.normal(kx, (SEQ_LEN, BATCH, INPUT_SIZE), dtype=jnp.float32)

    # --- unidirectional (module default) ---
    params_uni = init_gru_params(kp1, INPUT_SIZE, HIDDEN_SIZE, NUM_LAYERS, False)
    out_uni = jax.block_until_ready(
        rnn_block_forward(x, params_uni, HIDDEN_SIZE, NUM_LAYERS, False))
    ref_uni = rnn_block_reference(x, params_uni, HIDDEN_SIZE)
    assert out_uni.shape == (SEQ_LEN, HIDDEN_SIZE), out_uni.shape
    assert bool(jnp.all(jnp.isfinite(out_uni)))
    err_uni = float(jnp.max(jnp.abs(out_uni - ref_uni)))
    assert err_uni < 2e-2, err_uni

    # --- bidirectional ---
    params_bi = init_gru_params(kp2, INPUT_SIZE, HIDDEN_SIZE, NUM_LAYERS, True)
    out_bi = jax.block_until_ready(
        rnn_block_forward(x, params_bi, HIDDEN_SIZE, NUM_LAYERS, True))
    ref_bi = rnn_block_reference(x, params_bi, HIDDEN_SIZE)
    assert out_bi.shape == (SEQ_LEN, 2 * HIDDEN_SIZE), out_bi.shape
    assert bool(jnp.all(jnp.isfinite(out_bi)))
    err_bi = float(jnp.max(jnp.abs(out_bi - ref_bi)))
    assert err_bi < 2e-2, err_bi

    print("KERNEL_OK")
</pallas_src>

<mosaic_0001>
module attributes {stable_mosaic.version = 11 : i64} {
  func.func @kernel(%arg0: memref<8x8x192xf32, #tpu.memory_space<vmem>>, %arg1: memref<192x96xf32, #tpu.memory_space<vmem>>, %arg2: memref<32x96xbf16, #tpu.memory_space<vmem>>, %arg3: memref<1x96xf32, #tpu.memory_space<vmem>>, %arg4: memref<1x32xf32, #tpu.memory_space<vmem>>, %arg5: memref<32x96xf32, #tpu.memory_space<vmem>>, %arg6: memref<32x96xbf16, #tpu.memory_space<vmem>>, %arg7: memref<1x96xf32, #tpu.memory_space<vmem>>, %arg8: memref<1x32xf32, #tpu.memory_space<vmem>>, %arg9: memref<8x32xf32, #tpu.memory_space<vmem>>, %arg10: memref<8x8x96xf32, #tpu.memory_space<vmem>>, %arg11: memref<8x8x32xf32, #tpu.memory_space<vmem>>) attributes {dimension_semantics = [], scalar_prefetch = 0 : i64, scratch_operands = 2 : i64, tpu.core_type = #tpu.core_type<tc>} {
    %c0 = arith.constant 0 : index
    %c0_0 = arith.constant 0 : index
    %0 = vector.load %arg3[%c0, %c0_0] : memref<1x96xf32, #tpu.memory_space<vmem>>, vector<1x96xf32>
    %c0_1 = arith.constant 0 : index
    %c0_2 = arith.constant 0 : index
    %1 = vector.load %arg1[%c0_1, %c0_2] : memref<192x96xf32, #tpu.memory_space<vmem>>, vector<192x96xf32>
    %c0_3 = arith.constant 0 : index
    %c0_4 = arith.constant 0 : index
    %c0_5 = arith.constant 0 : index
    %2 = vector.load %arg0[%c0_3, %c0_4, %c0_5] : memref<8x8x192xf32, #tpu.memory_space<vmem>>, vector<8x8x192xf32>
    %3 = vector.shape_cast %2 : vector<8x8x192xf32> to vector<64x192xf32>
    %cst = arith.constant dense<0.000000e+00> : vector<64x96xf32>
    %4 = tpu.matmul %3, %1, %cst {dimension_numbers = #tpu.dot_dimension_numbers<[1], [0], [0], [1], [0, 0, 1, 1], [], []>} : vector<64x192xf32>, vector<192x96xf32>, vector<64x96xf32> -> vector<64x96xf32>
    %5 = vector.broadcast %0 : vector<1x96xf32> to vector<64x96xf32>
    %6 = arith.addf %4, %5 : vector<64x96xf32>
    %7 = vector.shape_cast %6 : vector<64x96xf32> to vector<8x8x96xf32>
    %c0_6 = arith.constant 0 : index
    %c0_7 = arith.constant 0 : index
    %c0_8 = arith.constant 0 : index
    %8 = vector.load %arg10[%c0_6, %c0_7, %c0_8] : memref<8x8x96xf32, #tpu.memory_space<vmem>>, vector<8x8x96xf32>
    tpu.vector_store %arg10[%c0_6, %c0_7, %c0_8], %7 {strides = array<i32>} : memref<8x8x96xf32, #tpu.memory_space<vmem>>, vector<8x8x96xf32>,
    %c0_9 = arith.constant 0 : index
    %c0_10 = arith.constant 0 : index
    %9 = vector.load %arg2[%c0_9, %c0_10] : memref<32x96xbf16, #tpu.memory_space<vmem>>, vector<32x96xbf16>
    %c0_11 = arith.constant 0 : index
    %c0_12 = arith.constant 0 : index
    %10 = vector.load %arg4[%c0_11, %c0_12] : memref<1x32xf32, #tpu.memory_space<vmem>>, vector<1x32xf32>
    %cst_13 = arith.constant 0.000000e+00 : f32
    %11 = vector.broadcast %cst_13 : f32 to vector<8x32xf32>
    %c0_i32 = arith.constant 0 : i32
    %12 = arith.index_cast %c0_i32 : i32 to index
    %c0_14 = arith.constant 0 : index
    %c0_15 = arith.constant 0 : index
    %13 = vector.load %arg10[%12, %c0_14, %c0_15] : memref<8x8x96xf32, #tpu.memory_space<vmem>>, vector<1x8x96xf32>
    %14 = vector.shape_cast %13 : vector<1x8x96xf32> to vector<8x96xf32>
    %15 = arith.truncf %11 : vector<8x32xf32> to vector<8x32xbf16>
    %cst_16 = arith.constant dense<0.000000e+00> : vector<8x96xf32>
    %16 = tpu.matmul %15, %9, %cst_16 {dimension_numbers = #tpu.dot_dimension_numbers<[1], [0], [0], [1], [0, 0, 1, 1], [], []>} : vector<8x32xbf16>, vector<32x96xbf16>, vector<8x96xf32> -> vector<8x96xf32>
    %17 = vector.extract_strided_slice %14 {offsets = [0, 0], sizes = [8, 64], strides = [1, 1]} : vector<8x96xf32> to vector<8x64xf32>
    %18 = vector.extract_strided_slice %16 {offsets = [0, 0], sizes = [8, 64], strides = [1, 1]} : vector<8x96xf32> to vector<8x64xf32>
    %19 = arith.addf %17, %18 : vector<8x64xf32>
    %20 = arith.negf %19 : vector<8x64xf32>
    %21 = math.exp %20 : vector<8x64xf32>
    %cst_17 = arith.constant 1.000000e+00 : f32
    %22 = vector.broadcast %cst_17 : f32 to vector<8x64xf32>
    %23 = arith.addf %22, %21 : vector<8x64xf32>
    %24 = arith.divf %22, %23 : vector<8x64xf32>
    %25 = vector.extract_strided_slice %24 {offsets = [0, 0], sizes = [8, 32], strides = [1, 1]} : vector<8x64xf32> to vector<8x32xf32>
    %26 = vector.extract_strided_slice %24 {offsets = [0, 32], sizes = [8, 32], strides = [1, 1]} : vector<8x64xf32> to vector<8x32xf32>
    %27 = vector.extract_strided_slice %14 {offsets = [0, 64], sizes = [8, 32], strides = [1, 1]} : vector<8x96xf32> to vector<8x32xf32>
    %28 = vector.extract_strided_slice %16 {offsets = [0, 64], sizes = [8, 32], strides = [1, 1]} : vector<8x96xf32> to vector<8x32xf32>
    %29 = vector.broadcast %10 : vector<1x32xf32> to vector<8x32xf32>
    %30 = arith.addf %28, %29 : vector<8x32xf32>
    %31 = arith.mulf %25, %30 : vector<8x32xf32>
    %32 = arith.addf %27, %31 : vector<8x32xf32>
    %33 = math.tanh %32 : vector<8x32xf32>
    %34 = arith.subf %11, %33 : vector<8x32xf32>
    %35 = arith.mulf %26, %34 : vector<8x32xf32>
    %36 = arith.addf %33, %35 : vector<8x32xf32>
    %37 = arith.index_cast %c0_i32 : i32 to index
    %c0_18 = arith.constant 0 : index
    %c0_19 = arith.constant 0 : index
    %38 = vector.load %arg11[%37, %c0_18, %c0_19] : memref<8x8x32xf32, #tpu.memory_space<vmem>>, vector<1x8x32xf32>
    %39 = vector.shape_cast %38 : vector<1x8x32xf32> to vector<8x32xf32>
    %40 = vector.shape_cast %36 : vector<8x32xf32> to vector<1x8x32xf32>
    tpu.vector_store %arg11[%37, %c0_18, %c0_19], %40 {strides = array<i32>} : memref<8x8x32xf32, #tpu.memory_space<vmem>>, vector<1x8x32xf32>,
    %c1_i32 = arith.constant 1 : i32
    %41 = arith.index_cast %c1_i32 : i32 to index
    %c0_20 = arith.constant 0 : index
    %c0_21 = arith.constant 0 : index
    %42 = vector.load %arg10[%41, %c0_20, %c0_21] : memref<8x8x96xf32, #tpu.memory_space<vmem>>, vector<1x8x96xf32>
    %43 = vector.shape_cast %42 : vector<1x8x96xf32> to vector<8x96xf32>
    %44 = arith.truncf %36 : vector<8x32xf32> to vector<8x32xbf16>
    %cst_22 = arith.constant dense<0.000000e+00> : vector<8x96xf32>
    %45 = tpu.matmul %44, %9, %cst_22 {dimension_numbers = #tpu.dot_dimension_numbers<[1], [0], [0], [1], [0, 0, 1, 1], [], []>} : vector<8x32xbf16>, vector<32x96xbf16>, vector<8x96xf32> -> vector<8x96xf32>
    %46 = vector.extract_strided_slice %43 {offsets = [0, 0], sizes = [8, 64], strides = [1, 1]} : vector<8x96xf32> to vector<8x64xf32>
    %47 = vector.extract_strided_slice %45 {offsets = [0, 0], sizes = [8, 64], strides = [1, 1]} : vector<8x96xf32> to vector<8x64xf32>
    %48 = arith.addf %46, %47 : vector<8x64xf32>
    %49 = arith.negf %48 : vector<8x64xf32>
    %50 = math.exp %49 : vector<8x64xf32>
    %cst_23 = arith.constant 1.000000e+00 : f32
    %51 = vector.broadcast %cst_23 : f32 to vector<8x64xf32>
    %52 = arith.addf %51, %50 : vector<8x64xf32>
    %53 = arith.divf %51, %52 : vector<8x64xf32>
    %54 = vector.extract_strided_slice %53 {offsets = [0, 0], sizes = [8, 32], strides = [1, 1]} : vector<8x64xf32> to vector<8x32xf32>
    %55 = vector.extract_strided_slice %53 {offsets = [0, 32], sizes = [8, 32], strides = [1, 1]} : vector<8x64xf32> to vector<8x32xf32>
    %56 = vector.extract_strided_slice %43 {offsets = [0, 64], sizes = [8, 32], strides = [1, 1]} : vector<8x96xf32> to vector<8x32xf32>
    %57 = vector.extract_strided_slice %45 {offsets = [0, 64], sizes = [8, 32], strides = [1, 1]} : vector<8x96xf32> to vector<8x32xf32>
    %58 = vector.broadcast %10 : vector<1x32xf32> to vector<8x32xf32>
    %59 = arith.addf %57, %58 : vector<8x32xf32>
    %60 = arith.mulf %54, %59 : vector<8x32xf32>
    %61 = arith.addf %56, %60 : vector<8x32xf32>
    %62 = math.tanh %61 : vector<8x32xf32>
    %63 = arith.subf %36, %62 : vector<8x32xf32>
    %64 = arith.mulf %55, %63 : vector<8x32xf32>
    %65 = arith.addf %62, %64 : vector<8x32xf32>
    %66 = arith.index_cast %c1_i32 : i32 to index
    %c0_24 = arith.constant 0 : index
    %c0_25 = arith.constant 0 : index
    %67 = vector.load %arg11[%66, %c0_24, %c0_25] : memref<8x8x32xf32, #tpu.memory_space<vmem>>, vector<1x8x32xf32>
    %68 = vector.shape_cast %67 : vector<1x8x32xf32> to vector<8x32xf32>
    %69 = vector.shape_cast %65 : vector<8x32xf32> to vector<1x8x32xf32>
    tpu.vector_store %arg11[%66, %c0_24, %c0_25], %69 {strides = array<i32>} : memref<8x8x32xf32, #tpu.memory_space<vmem>>, vector<1x8x32xf32>,
    %c2_i32 = arith.constant 2 : i32
    %70 = arith.index_cast %c2_i32 : i32 to index
    %c0_26 = arith.constant 0 : index
    %c0_27 = arith.constant 0 : index
    %71 = vector.load %arg10[%70, %c0_26, %c0_27] : memref<8x8x96xf32, #tpu.memory_space<vmem>>, vector<1x8x96xf32>
    %72 = vector.shape_cast %71 : vector<1x8x96xf32> to vector<8x96xf32>
    %73 = arith.truncf %65 : vector<8x32xf32> to vector<8x32xbf16>
    %cst_28 = arith.constant dense<0.000000e+00> : vector<8x96xf32>
    %74 = tpu.matmul %73, %9, %cst_28 {dimension_numbers = #tpu.dot_dimension_numbers<[1], [0], [0], [1], [0, 0, 1, 1], [], []>} : vector<8x32xbf16>, vector<32x96xbf16>, vector<8x96xf32> -> vector<8x96xf32>
    %75 = vector.extract_strided_slice %72 {offsets = [0, 0], sizes = [8, 64], strides = [1, 1]} : vector<8x96xf32> to vector<8x64xf32>
    %76 = vector.extract_strided_slice %74 {offsets = [0, 0], sizes = [8, 64], strides = [1, 1]} : vector<8x96xf32> to vector<8x64xf32>
    %77 = arith.addf %75, %76 : vector<8x64xf32>
    %78 = arith.negf %77 : vector<8x64xf32>
    %79 = math.exp %78 : vector<8x64xf32>
    %cst_29 = arith.constant 1.000000e+00 : f32
    %80 = vector.broadcast %cst_29 : f32 to vector<8x64xf32>
    %81 = arith.addf %80, %79 : vector<8x64xf32>
    %82 = arith.divf %80, %81 : vector<8x64xf32>
    %83 = vector.extract_strided_slice %82 {offsets = [0, 0], sizes = [8, 32], strides = [1, 1]} : vector<8x64xf32> to vector<8x32xf32>
    %84 = vector.extract_strided_slice %82 {offsets = [0, 32], sizes = [8, 32], strides = [1, 1]} : vector<8x64xf32> to vector<8x32xf32>
    %85 = vector.extract_strided_slice %72 {offsets = [0, 64], sizes = [8, 32], strides = [1, 1]} : vector<8x96xf32> to vector<8x32xf32>
    %86 = vector.extract_strided_slice %74 {offsets = [0, 64], sizes = [8, 32], strides = [1, 1]} : vector<8x96xf32> to vector<8x32xf32>
    %87 = vector.broadcast %10 : vector<1x32xf32> to vector<8x32xf32>
    %88 = arith.addf %86, %87 : vector<8x32xf32>
    %89 = arith.mulf %83, %88 : vector<8x32xf32>
    %90 = arith.addf %85, %89 : vector<8x32xf32>
    %91 = math.tanh %90 : vector<8x32xf32>
    %92 = arith.subf %65, %91 : vector<8x32xf32>
    %93 = arith.mulf %84, %92 : vector<8x32xf32>
    %94 = arith.addf %91, %93 : vector<8x32xf32>
    %95 = arith.index_cast %c2_i32 : i32 to index
    %c0_30 = arith.constant 0 : index
    %c0_31 = arith.constant 0 : index
    %96 = vector.load %arg11[%95, %c0_30, %c0_31] : memref<8x8x32xf32, #tpu.memory_space<vmem>>, vector<1x8x32xf32>
    %97 = vector.shape_cast %96 : vector<1x8x32xf32> to vector<8x32xf32>
    %98 = vector.shape_cast %94 : vector<8x32xf32> to vector<1x8x32xf32>
    tpu.vector_store %arg11[%95, %c0_30, %c0_31], %98 {strides = array<i32>} : memref<8x8x32xf32, #tpu.memory_space<vmem>>, vector<1x8x32xf32>,
    %c3_i32 = arith.constant 3 : i32
    %99 = arith.index_cast %c3_i32 : i32 to index
    %c0_32 = arith.constant 0 : index
    %c0_33 = arith.constant 0 : index
    %100 = vector.load %arg10[%99, %c0_32, %c0_33] : memref<8x8x96xf32, #tpu.memory_space<vmem>>, vector<1x8x96xf32>
    %101 = vector.shape_cast %100 : vector<1x8x96xf32> to vector<8x96xf32>
    %102 = arith.truncf %94 : vector<8x32xf32> to vector<8x32xbf16>
    %cst_34 = arith.constant dense<0.000000e+00> : vector<8x96xf32>
    %103 = tpu.matmul %102, %9, %cst_34 {dimension_numbers = #tpu.dot_dimension_numbers<[1], [0], [0], [1], [0, 0, 1, 1], [], []>} : vector<8x32xbf16>, vector<32x96xbf16>, vector<8x96xf32> -> vector<8x96xf32>
    %104 = vector.extract_strided_slice %101 {offsets = [0, 0], sizes = [8, 64], strides = [1, 1]} : vector<8x96xf32> to vector<8x64xf32>
    %105 = vector.extract_strided_slice %103 {offsets = [0, 0], sizes = [8, 64], strides = [1, 1]} : vector<8x96xf32> to vector<8x64xf32>
    %106 = arith.addf %104, %105 : vector<8x64xf32>
    %107 = arith.negf %106 : vector<8x64xf32>
    %108 = math.exp %107 : vector<8x64xf32>
    %cst_35 = arith.constant 1.000000e+00 : f32
    %109 = vector.broadcast %cst_35 : f32 to vector<8x64xf32>
    %110 = arith.addf %109, %108 : vector<8x64xf32>
    %111 = arith.divf %109, %110 : vector<8x64xf32>
    %112 = vector.extract_strided_slice %111 {offsets = [0, 0], sizes = [8, 32], strides = [1, 1]} : vector<8x64xf32> to vector<8x32xf32>
    %113 = vector.extract_strided_slice %111 {offsets = [0, 32], sizes = [8, 32], strides = [1, 1]} : vector<8x64xf32> to vector<8x32xf32>
    %114 = vector.extract_strided_slice %101 {offsets = [0, 64], sizes = [8, 32], strides = [1, 1]} : vector<8x96xf32> to vector<8x32xf32>
    %115 = vector.extract_strided_slice %103 {offsets = [0, 64], sizes = [8, 32], strides = [1, 1]} : vector<8x96xf32> to vector<8x32xf32>
    %116 = vector.broadcast %10 : vector<1x32xf32> to vector<8x32xf32>
    %117 = arith.addf %115, %116 : vector<8x32xf32>
    %118 = arith.mulf %112, %117 : vector<8x32xf32>
    %119 = arith.addf %114, %118 : vector<8x32xf32>
    %120 = math.tanh %119 : vector<8x32xf32>
    %121 = arith.subf %94, %120 : vector<8x32xf32>
    %122 = arith.mulf %113, %121 : vector<8x32xf32>
    %123 = arith.addf %120, %122 : vector<8x32xf32>
    %124 = arith.index_cast %c3_i32 : i32 to index
    %c0_36 = arith.constant 0 : index
    %c0_37 = arith.constant 0 : index
    %125 = vector.load %arg11[%124, %c0_36, %c0_37] : memref<8x8x32xf32, #tpu.memory_space<vmem>>, vector<1x8x32xf32>
    %126 = vector.shape_cast %125 : vector<1x8x32xf32> to vector<8x32xf32>
    %127 = vector.shape_cast %123 : vector<8x32xf32> to vector<1x8x32xf32>
    tpu.vector_store %arg11[%124, %c0_36, %c0_37], %127 {strides = array<i32>} : memref<8x8x32xf32, #tpu.memory_space<vmem>>, vector<1x8x32xf32>,
    %c4_i32 = arith.constant 4 : i32
    %128 = arith.index_cast %c4_i32 : i32 to index
    %c0_38 = arith.constant 0 : index
    %c0_39 = arith.constant 0 : index
    %129 = vector.load %arg10[%128, %c0_38, %c0_39] : memref<8x8x96xf32, #tpu.memory_space<vmem>>, vector<1x8x96xf32>
    %130 = vector.shape_cast %129 : vector<1x8x96xf32> to vector<8x96xf32>
    %131 = arith.truncf %123 : vector<8x32xf32> to vector<8x32xbf16>
    %cst_40 = arith.constant dense<0.000000e+00> : vector<8x96xf32>
    %132 = tpu.matmul %131, %9, %cst_40 {dimension_numbers = #tpu.dot_dimension_numbers<[1], [0], [0], [1], [0, 0, 1, 1], [], []>} : vector<8x32xbf16>, vector<32x96xbf16>, vector<8x96xf32> -> vector<8x96xf32>
    %133 = vector.extract_strided_slice %130 {offsets = [0, 0], sizes = [8, 64], strides = [1, 1]} : vector<8x96xf32> to vector<8x64xf32>
    %134 = vector.extract_strided_slice %132 {offsets = [0, 0], sizes = [8, 64], strides = [1, 1]} : vector<8x96xf32> to vector<8x64xf32>
    %135 = arith.addf %133, %134 : vector<8x64xf32>
    %136 = arith.negf %135 : vector<8x64xf32>
    %137 = math.exp %136 : vector<8x64xf32>
    %cst_41 = arith.constant 1.000000e+00 : f32
    %138 = vector.broadcast %cst_41 : f32 to vector<8x64xf32>
    %139 = arith.addf %138, %137 : vector<8x64xf32>
    %140 = arith.divf %138, %139 : vector<8x64xf32>
    %141 = vector.extract_strided_slice %140 {offsets = [0, 0], sizes = [8, 32], strides = [1, 1]} : vector<8x64xf32> to vector<8x32xf32>
    %142 = vector.extract_strided_slice %140 {offsets = [0, 32], sizes = [8, 32], strides = [1, 1]} : vector<8x64xf32> to vector<8x32xf32>
    %143 = vector.extract_strided_slice %130 {offsets = [0, 64], sizes = [8, 32], strides = [1, 1]} : vector<8x96xf32> to vector<8x32xf32>
    %144 = vector.extract_strided_slice %132 {offsets = [0, 64], sizes = [8, 32], strides = [1, 1]} : vector<8x96xf32> to vector<8x32xf32>
    %145 = vector.broadcast %10 : vector<1x32xf32> to vector<8x32xf32>
    %146 = arith.addf %144, %145 : vector<8x32xf32>
    %147 = arith.mulf %141, %146 : vector<8x32xf32>
    %148 = arith.addf %143, %147 : vector<8x32xf32>
    %149 = math.tanh %148 : vector<8x32xf32>
    %150 = arith.subf %123, %149 : vector<8x32xf32>
    %151 = arith.mulf %142, %150 : vector<8x32xf32>
    %152 = arith.addf %149, %151 : vector<8x32xf32>
    %153 = arith.index_cast %c4_i32 : i32 to index
    %c0_42 = arith.constant 0 : index
    %c0_43 = arith.constant 0 : index
    %154 = vector.load %arg11[%153, %c0_42, %c0_43] : memref<8x8x32xf32, #tpu.memory_space<vmem>>, vector<1x8x32xf32>
    %155 = vector.shape_cast %154 : vector<1x8x32xf32> to vector<8x32xf32>
    %156 = vector.shape_cast %152 : vector<8x32xf32> to vector<1x8x32xf32>
    tpu.vector_store %arg11[%153, %c0_42, %c0_43], %156 {strides = array<i32>} : memref<8x8x32xf32, #tpu.memory_space<vmem>>, vector<1x8x32xf32>,
    %c5_i32 = arith.constant 5 : i32
    %157 = arith.index_cast %c5_i32 : i32 to index
    %c0_44 = arith.constant 0 : index
    %c0_45 = arith.constant 0 : index
    %158 = vector.load %arg10[%157, %c0_44, %c0_45] : memref<8x8x96xf32, #tpu.memory_space<vmem>>, vector<1x8x96xf32>
    %159 = vector.shape_cast %158 : vector<1x8x96xf32> to vector<8x96xf32>
    %160 = arith.truncf %152 : vector<8x32xf32> to vector<8x32xbf16>
    %cst_46 = arith.constant dense<0.000000e+00> : vector<8x96xf32>
    %161 = tpu.matmul %160, %9, %cst_46 {dimension_numbers = #tpu.dot_dimension_numbers<[1], [0], [0], [1], [0, 0, 1, 1], [], []>} : vector<8x32xbf16>, vector<32x96xbf16>, vector<8x96xf32> -> vector<8x96xf32>
    %162 = vector.extract_strided_slice %159 {offsets = [0, 0], sizes = [8, 64], strides = [1, 1]} : vector<8x96xf32> to vector<8x64xf32>
    %163 = vector.extract_strided_slice %161 {offsets = [0, 0], sizes = [8, 64], strides = [1, 1]} : vector<8x96xf32> to vector<8x64xf32>
    %164 = arith.addf %162, %163 : vector<8x64xf32>
    %165 = arith.negf %164 : vector<8x64xf32>
    %166 = math.exp %165 : vector<8x64xf32>
    %cst_47 = arith.constant 1.000000e+00 : f32
    %167 = vector.broadcast %cst_47 : f32 to vector<8x64xf32>
    %168 = arith.addf %167, %166 : vector<8x64xf32>
    %169 = arith.divf %167, %168 : vector<8x64xf32>
    %170 = vector.extract_strided_slice %169 {offsets = [0, 0], sizes = [8, 32], strides = [1, 1]} : vector<8x64xf32> to vector<8x32xf32>
    %171 = vector.extract_strided_slice %169 {offsets = [0, 32], sizes = [8, 32], strides = [1, 1]} : vector<8x64xf32> to vector<8x32xf32>
    %172 = vector.extract_strided_slice %159 {offsets = [0, 64], sizes = [8, 32], strides = [1, 1]} : vector<8x96xf32> to vector<8x32xf32>
    %173 = vector.extract_strided_slice %161 {offsets = [0, 64], sizes = [8, 32], strides = [1, 1]} : vector<8x96xf32> to vector<8x32xf32>
    %174 = vector.broadcast %10 : vector<1x32xf32> to vector<8x32xf32>
    %175 = arith.addf %173, %174 : vector<8x32xf32>
    %176 = arith.mulf %170, %175 : vector<8x32xf32>
    %177 = arith.addf %172, %176 : vector<8x32xf32>
    %178 = math.tanh %177 : vector<8x32xf32>
    %179 = arith.subf %152, %178 : vector<8x32xf32>
    %180 = arith.mulf %171, %179 : vector<8x32xf32>
    %181 = arith.addf %178, %180 : vector<8x32xf32>
    %182 = arith.index_cast %c5_i32 : i32 to index
    %c0_48 = arith.constant 0 : index
    %c0_49 = arith.constant 0 : index
    %183 = vector.load %arg11[%182, %c0_48, %c0_49] : memref<8x8x32xf32, #tpu.memory_space<vmem>>, vector<1x8x32xf32>
    %184 = vector.shape_cast %183 : vector<1x8x32xf32> to vector<8x32xf32>
    %185 = vector.shape_cast %181 : vector<8x32xf32> to vector<1x8x32xf32>
    tpu.vector_store %arg11[%182, %c0_48, %c0_49], %185 {strides = array<i32>} : memref<8x8x32xf32, #tpu.memory_space<vmem>>, vector<1x8x32xf32>,
    %c6_i32 = arith.constant 6 : i32
    %186 = arith.index_cast %c6_i32 : i32 to index
    %c0_50 = arith.constant 0 : index
    %c0_51 = arith.constant 0 : index
    %187 = vector.load %arg10[%186, %c0_50, %c0_51] : memref<8x8x96xf32, #tpu.memory_space<vmem>>, vector<1x8x96xf32>
    %188 = vector.shape_cast %187 : vector<1x8x96xf32> to vector<8x96xf32>
    %189 = arith.truncf %181 : vector<8x32xf32> to vector<8x32xbf16>
    %cst_52 = arith.constant dense<0.000000e+00> : vector<8x96xf32>
    %190 = tpu.matmul %189, %9, %cst_52 {dimension_numbers = #tpu.dot_dimension_numbers<[1], [0], [0], [1], [0, 0, 1, 1], [], []>} : vector<8x32xbf16>, vector<32x96xbf16>, vector<8x96xf32> -> vector<8x96xf32>
    %191 = vector.extract_strided_slice %188 {offsets = [0, 0], sizes = [8, 64], strides = [1, 1]} : vector<8x96xf32> to vector<8x64xf32>
    %192 = vector.extract_strided_slice %190 {offsets = [0, 0], sizes = [8, 64], strides = [1, 1]} : vector<8x96xf32> to vector<8x64xf32>
    %193 = arith.addf %191, %192 : vector<8x64xf32>
    %194 = arith.negf %193 : vector<8x64xf32>
    %195 = math.exp %194 : vector<8x64xf32>
    %cst_53 = arith.constant 1.000000e+00 : f32
    %196 = vector.broadcast %cst_53 : f32 to vector<8x64xf32>
    %197 = arith.addf %196, %195 : vector<8x64xf32>
    %198 = arith.divf %196, %197 : vector<8x64xf32>
    %199 = vector.extract_strided_slice %198 {offsets = [0, 0], sizes = [8, 32], strides = [1, 1]} : vector<8x64xf32> to vector<8x32xf32>
    %200 = vector.extract_strided_slice %198 {offsets = [0, 32], sizes = [8, 32], strides = [1, 1]} : vector<8x64xf32> to vector<8x32xf32>
    %201 = vector.extract_strided_slice %188 {offsets = [0, 64], sizes = [8, 32], strides = [1, 1]} : vector<8x96xf32> to vector<8x32xf32>
    %202 = vector.extract_strided_slice %190 {offsets = [0, 64], sizes = [8, 32], strides = [1, 1]} : vector<8x96xf32> to vector<8x32xf32>
    %203 = vector.broadcast %10 : vector<1x32xf32> to vector<8x32xf32>
    %204 = arith.addf %202, %203 : vector<8x32xf32>
    %205 = arith.mulf %199, %204 : vector<8x32xf32>
    %206 = arith.addf %201, %205 : vector<8x32xf32>
    %207 = math.tanh %206 : vector<8x32xf32>
    %208 = arith.subf %181, %207 : vector<8x32xf32>
    %209 = arith.mulf %200, %208 : vector<8x32xf32>
    %210 = arith.addf %207, %209 : vector<8x32xf32>
    %211 = arith.index_cast %c6_i32 : i32 to index
    %c0_54 = arith.constant 0 : index
    %c0_55 = arith.constant 0 : index
    %212 = vector.load %arg11[%211, %c0_54, %c0_55] : memref<8x8x32xf32, #tpu.memory_space<vmem>>, vector<1x8x32xf32>
    %213 = vector.shape_cast %212 : vector<1x8x32xf32> to vector<8x32xf32>
    %214 = vector.shape_cast %210 : vector<8x32xf32> to vector<1x8x32xf32>
    tpu.vector_store %arg11[%211, %c0_54, %c0_55], %214 {strides = array<i32>} : memref<8x8x32xf32, #tpu.memory_space<vmem>>, vector<1x8x32xf32>,
    %c7_i32 = arith.constant 7 : i32
    %215 = arith.index_cast %c7_i32 : i32 to index
    %c0_56 = arith.constant 0 : index
    %c0_57 = arith.constant 0 : index
    %216 = vector.load %arg10[%215, %c0_56, %c0_57] : memref<8x8x96xf32, #tpu.memory_space<vmem>>, vector<1x8x96xf32>
    %217 = vector.shape_cast %216 : vector<1x8x96xf32> to vector<8x96xf32>
    %218 = arith.truncf %210 : vector<8x32xf32> to vector<8x32xbf16>
    %cst_58 = arith.constant dense<0.000000e+00> : vector<8x96xf32>
    %219 = tpu.matmul %218, %9, %cst_58 {dimension_numbers = #tpu.dot_dimension_numbers<[1], [0], [0], [1], [0, 0, 1, 1], [], []>} : vector<8x32xbf16>, vector<32x96xbf16>, vector<8x96xf32> -> vector<8x96xf32>
    %220 = vector.extract_strided_slice %217 {offsets = [0, 0], sizes = [8, 64], strides = [1, 1]} : vector<8x96xf32> to vector<8x64xf32>
    %221 = vector.extract_strided_slice %219 {offsets = [0, 0], sizes = [8, 64], strides = [1, 1]} : vector<8x96xf32> to vector<8x64xf32>
    %222 = arith.addf %220, %221 : vector<8x64xf32>
    %223 = arith.negf %222 : vector<8x64xf32>
    %224 = math.exp %223 : vector<8x64xf32>
    %cst_59 = arith.constant 1.000000e+00 : f32
    %225 = vector.broadcast %cst_59 : f32 to vector<8x64xf32>
    %226 = arith.addf %225, %224 : vector<8x64xf32>
    %227 = arith.divf %225, %226 : vector<8x64xf32>
    %228 = vector.extract_strided_slice %227 {offsets = [0, 0], sizes = [8, 32], strides = [1, 1]} : vector<8x64xf32> to vector<8x32xf32>
    %229 = vector.extract_strided_slice %227 {offsets = [0, 32], sizes = [8, 32], strides = [1, 1]} : vector<8x64xf32> to vector<8x32xf32>
    %230 = vector.extract_strided_slice %217 {offsets = [0, 64], sizes = [8, 32], strides = [1, 1]} : vector<8x96xf32> to vector<8x32xf32>
    %231 = vector.extract_strided_slice %219 {offsets = [0, 64], sizes = [8, 32], strides = [1, 1]} : vector<8x96xf32> to vector<8x32xf32>
    %232 = vector.broadcast %10 : vector<1x32xf32> to vector<8x32xf32>
    %233 = arith.addf %231, %232 : vector<8x32xf32>
    %234 = arith.mulf %228, %233 : vector<8x32xf32>
    %235 = arith.addf %230, %234 : vector<8x32xf32>
    %236 = math.tanh %235 : vector<8x32xf32>
    %237 = arith.subf %210, %236 : vector<8x32xf32>
    %238 = arith.mulf %229, %237 : vector<8x32xf32>
    %239 = arith.addf %236, %238 : vector<8x32xf32>
    %240 = arith.index_cast %c7_i32 : i32 to index
    %c0_60 = arith.constant 0 : index
    %c0_61 = arith.constant 0 : index
    %241 = vector.load %arg11[%240, %c0_60, %c0_61] : memref<8x8x32xf32, #tpu.memory_space<vmem>>, vector<1x8x32xf32>
    %242 = vector.shape_cast %241 : vector<1x8x32xf32> to vector<8x32xf32>
    %243 = vector.shape_cast %239 : vector<8x32xf32> to vector<1x8x32xf32>
    tpu.vector_store %arg11[%240, %c0_60, %c0_61], %243 {strides = array<i32>} : memref<8x8x32xf32, #tpu.memory_space<vmem>>, vector<1x8x32xf32>,
    %c8_i32 = arith.constant 8 : i32
    %c0_62 = arith.constant 0 : index
    %c0_63 = arith.constant 0 : index
    %244 = vector.load %arg7[%c0_62, %c0_63] : memref<1x96xf32, #tpu.memory_space<vmem>>, vector<1x96xf32>
    %c0_64 = arith.constant 0 : index
    %c0_65 = arith.constant 0 : index
    %245 = vector.load %arg5[%c0_64, %c0_65] : memref<32x96xf32, #tpu.memory_space<vmem>>, vector<32x96xf32>
    %c0_66 = arith.constant 0 : index
    %c0_67 = arith.constant 0 : index
    %c0_68 = arith.constant 0 : index
    %246 = vector.load %arg11[%c0_66, %c0_67, %c0_68] : memref<8x8x32xf32, #tpu.memory_space<vmem>>, vector<8x8x32xf32>
    %247 = vector.shape_cast %246 : vector<8x8x32xf32> to vector<64x32xf32>
    %cst_69 = arith.constant dense<0.000000e+00> : vector<64x96xf32>
    %248 = tpu.matmul %247, %245, %cst_69 {dimension_numbers = #tpu.dot_dimension_numbers<[1], [0], [0], [1], [0, 0, 1, 1], [], []>} : vector<64x32xf32>, vector<32x96xf32>, vector<64x96xf32> -> vector<64x96xf32>
    %249 = vector.broadcast %244 : vector<1x96xf32> to vector<64x96xf32>
    %250 = arith.addf %248, %249 : vector<64x96xf32>
    %251 = vector.shape_cast %250 : vector<64x96xf32> to vector<8x8x96xf32>
    %c0_70 = arith.constant 0 : index
    %c0_71 = arith.constant 0 : index
    %c0_72 = arith.constant 0 : index
    %252 = vector.load %arg10[%c0_70, %c0_71, %c0_72] : memref<8x8x96xf32, #tpu.memory_space<vmem>>, vector<8x8x96xf32>
    tpu.vector_store %arg10[%c0_70, %c0_71, %c0_72], %251 {strides = array<i32>} : memref<8x8x96xf32, #tpu.memory_space<vmem>>, vector<8x8x96xf32>,
    %c0_73 = arith.constant 0 : index
    %c0_74 = arith.constant 0 : index
    %253 = vector.load %arg6[%c0_73, %c0_74] : memref<32x96xbf16, #tpu.memory_space<vmem>>, vector<32x96xbf16>
    %c0_75 = arith.constant 0 : index
    %c0_76 = arith.constant 0 : index
    %254 = vector.load %arg8[%c0_75, %c0_76] : memref<1x32xf32, #tpu.memory_space<vmem>>, vector<1x32xf32>
    %cst_77 = arith.constant 0.000000e+00 : f32
    %255 = vector.broadcast %cst_77 : f32 to vector<8x32xf32>
    %c0_i32_78 = arith.constant 0 : i32
    %256 = arith.index_cast %c0_i32_78 : i32 to index
    %c0_79 = arith.constant 0 : index
    %c0_80 = arith.constant 0 : index
    %257 = vector.load %arg10[%256, %c0_79, %c0_80] : memref<8x8x96xf32, #tpu.memory_space<vmem>>, vector<1x8x96xf32>
    %258 = vector.shape_cast %257 : vector<1x8x96xf32> to vector<8x96xf32>
    %259 = arith.truncf %255 : vector<8x32xf32> to vector<8x32xbf16>
    %cst_81 = arith.constant dense<0.000000e+00> : vector<8x96xf32>
    %260 = tpu.matmul %259, %253, %cst_81 {dimension_numbers = #tpu.dot_dimension_numbers<[1], [0], [0], [1], [0, 0, 1, 1], [], []>} : vector<8x32xbf16>, vector<32x96xbf16>, vector<8x96xf32> -> vector<8x96xf32>
    %261 = vector.extract_strided_slice %258 {offsets = [0, 0], sizes = [8, 64], strides = [1, 1]} : vector<8x96xf32> to vector<8x64xf32>
    %262 = vector.extract_strided_slice %260 {offsets = [0, 0], sizes = [8, 64], strides = [1, 1]} : vector<8x96xf32> to vector<8x64xf32>
    %263 = arith.addf %261, %262 : vector<8x64xf32>
    %264 = arith.negf %263 : vector<8x64xf32>
    %265 = math.exp %264 : vector<8x64xf32>
    %cst_82 = arith.constant 1.000000e+00 : f32
    %266 = vector.broadcast %cst_82 : f32 to vector<8x64xf32>
    %267 = arith.addf %266, %265 : vector<8x64xf32>
    %268 = arith.divf %266, %267 : vector<8x64xf32>
    %269 = vector.extract_strided_slice %268 {offsets = [0, 0], sizes = [8, 32], strides = [1, 1]} : vector<8x64xf32> to vector<8x32xf32>
    %270 = vector.extract_strided_slice %268 {offsets = [0, 32], sizes = [8, 32], strides = [1, 1]} : vector<8x64xf32> to vector<8x32xf32>
    %271 = vector.extract_strided_slice %258 {offsets = [0, 64], sizes = [8, 32], strides = [1, 1]} : vector<8x96xf32> to vector<8x32xf32>
    %272 = vector.extract_strided_slice %260 {offsets = [0, 64], sizes = [8, 32], strides = [1, 1]} : vector<8x96xf32> to vector<8x32xf32>
    %273 = vector.broadcast %254 : vector<1x32xf32> to vector<8x32xf32>
    %274 = arith.addf %272, %273 : vector<8x32xf32>
    %275 = arith.mulf %269, %274 : vector<8x32xf32>
    %276 = arith.addf %271, %275 : vector<8x32xf32>
    %277 = math.tanh %276 : vector<8x32xf32>
    %278 = arith.subf %255, %277 : vector<8x32xf32>
    %279 = arith.mulf %270, %278 : vector<8x32xf32>
    %280 = arith.addf %277, %279 : vector<8x32xf32>
    %281 = arith.index_cast %c0_i32_78 : i32 to index
    %c0_83 = arith.constant 0 : index
    %c0_84 = arith.constant 0 : index
    %282 = vector.load %arg11[%281, %c0_83, %c0_84] : memref<8x8x32xf32, #tpu.memory_space<vmem>>, vector<1x8x32xf32>
    %283 = vector.shape_cast %282 : vector<1x8x32xf32> to vector<8x32xf32>
    %284 = vector.shape_cast %280 : vector<8x32xf32> to vector<1x8x32xf32>
    tpu.vector_store %arg11[%281, %c0_83, %c0_84], %284 {strides = array<i32>} : memref<8x8x32xf32, #tpu.memory_space<vmem>>, vector<1x8x32xf32>,
    %c1_i32_85 = arith.constant 1 : i32
    %285 = arith.index_cast %c1_i32_85 : i32 to index
    %c0_86 = arith.constant 0 : index
    %c0_87 = arith.constant 0 : index
    %286 = vector.load %arg10[%285, %c0_86, %c0_87] : memref<8x8x96xf32, #tpu.memory_space<vmem>>, vector<1x8x96xf32>
    %287 = vector.shape_cast %286 : vector<1x8x96xf32> to vector<8x96xf32>
    %288 = arith.truncf %280 : vector<8x32xf32> to vector<8x32xbf16>
    %cst_88 = arith.constant dense<0.000000e+00> : vector<8x96xf32>
    %289 = tpu.matmul %288, %253, %cst_88 {dimension_numbers = #tpu.dot_dimension_numbers<[1], [0], [0], [1], [0, 0, 1, 1], [], []>} : vector<8x32xbf16>, vector<32x96xbf16>, vector<8x96xf32> -> vector<8x96xf32>
    %290 = vector.extract_strided_slice %287 {offsets = [0, 0], sizes = [8, 64], strides = [1, 1]} : vector<8x96xf32> to vector<8x64xf32>
    %291 = vector.extract_strided_slice %289 {offsets = [0, 0], sizes = [8, 64], strides = [1, 1]} : vector<8x96xf32> to vector<8x64xf32>
    %292 = arith.addf %290, %291 : vector<8x64xf32>
    %293 = arith.negf %292 : vector<8x64xf32>
    %294 = math.exp %293 : vector<8x64xf32>
    %cst_89 = arith.constant 1.000000e+00 : f32
    %295 = vector.broadcast %cst_89 : f32 to vector<8x64xf32>
    %296 = arith.addf %295, %294 : vector<8x64xf32>
    %297 = arith.divf %295, %296 : vector<8x64xf32>
    %298 = vector.extract_strided_slice %297 {offsets = [0, 0], sizes = [8, 32], strides = [1, 1]} : vector<8x64xf32> to vector<8x32xf32>
    %299 = vector.extract_strided_slice %297 {offsets = [0, 32], sizes = [8, 32], strides = [1, 1]} : vector<8x64xf32> to vector<8x32xf32>
    %300 = vector.extract_strided_slice %287 {offsets = [0, 64], sizes = [8, 32], strides = [1, 1]} : vector<8x96xf32> to vector<8x32xf32>
    %301 = vector.extract_strided_slice %289 {offsets = [0, 64], sizes = [8, 32], strides = [1, 1]} : vector<8x96xf32> to vector<8x32xf32>
    %302 = vector.broadcast %254 : vector<1x32xf32> to vector<8x32xf32>
    %303 = arith.addf %301, %302 : vector<8x32xf32>
    %304 = arith.mulf %298, %303 : vector<8x32xf32>
    %305 = arith.addf %300, %304 : vector<8x32xf32>
    %306 = math.tanh %305 : vector<8x32xf32>
    %307 = arith.subf %280, %306 : vector<8x32xf32>
    %308 = arith.mulf %299, %307 : vector<8x32xf32>
    %309 = arith.addf %306, %308 : vector<8x32xf32>
    %310 = arith.index_cast %c1_i32_85 : i32 to index
    %c0_90 = arith.constant 0 : index
    %c0_91 = arith.constant 0 : index
    %311 = vector.load %arg11[%310, %c0_90, %c0_91] : memref<8x8x32xf32, #tpu.memory_space<vmem>>, vector<1x8x32xf32>
    %312 = vector.shape_cast %311 : vector<1x8x32xf32> to vector<8x32xf32>
    %313 = vector.shape_cast %309 : vector<8x32xf32> to vector<1x8x32xf32>
    tpu.vector_store %arg11[%310, %c0_90, %c0_91], %313 {strides = array<i32>} : memref<8x8x32xf32, #tpu.memory_space<vmem>>, vector<1x8x32xf32>,
    %c2_i32_92 = arith.constant 2 : i32
    %314 = arith.index_cast %c2_i32_92 : i32 to index
    %c0_93 = arith.constant 0 : index
    %c0_94 = arith.constant 0 : index
    %315 = vector.load %arg10[%314, %c0_93, %c0_94] : memref<8x8x96xf32, #tpu.memory_space<vmem>>, vector<1x8x96xf32>
    %316 = vector.shape_cast %315 : vector<1x8x96xf32> to vector<8x96xf32>
    %317 = arith.truncf %309 : vector<8x32xf32> to vector<8x32xbf16>
    %cst_95 = arith.constant dense<0.000000e+00> : vector<8x96xf32>
    %318 = tpu.matmul %317, %253, %cst_95 {dimension_numbers = #tpu.dot_dimension_numbers<[1], [0], [0], [1], [0, 0, 1, 1], [], []>} : vector<8x32xbf16>, vector<32x96xbf16>, vector<8x96xf32> -> vector<8x96xf32>
    %319 = vector.extract_strided_slice %316 {offsets = [0, 0], sizes = [8, 64], strides = [1, 1]} : vector<8x96xf32> to vector<8x64xf32>
    %320 = vector.extract_strided_slice %318 {offsets = [0, 0], sizes = [8, 64], strides = [1, 1]} : vector<8x96xf32> to vector<8x64xf32>
    %321 = arith.addf %319, %320 : vector<8x64xf32>
    %322 = arith.negf %321 : vector<8x64xf32>
    %323 = math.exp %322 : vector<8x64xf32>
    %cst_96 = arith.constant 1.000000e+00 : f32
    %324 = vector.broadcast %cst_96 : f32 to vector<8x64xf32>
    %325 = arith.addf %324, %323 : vector<8x64xf32>
    %326 = arith.divf %324, %325 : vector<8x64xf32>
    %327 = vector.extract_strided_slice %326 {offsets = [0, 0], sizes = [8, 32], strides = [1, 1]} : vector<8x64xf32> to vector<8x32xf32>
    %328 = vector.extract_strided_slice %326 {offsets = [0, 32], sizes = [8, 32], strides = [1, 1]} : vector<8x64xf32> to vector<8x32xf32>
    %329 = vector.extract_strided_slice %316 {offsets = [0, 64], sizes = [8, 32], strides = [1, 1]} : vector<8x96xf32> to vector<8x32xf32>
    %330 = vector.extract_strided_slice %318 {offsets = [0, 64], sizes = [8, 32], strides = [1, 1]} : vector<8x96xf32> to vector<8x32xf32>
    %331 = vector.broadcast %254 : vector<1x32xf32> to vector<8x32xf32>
    %332 = arith.addf %330, %331 : vector<8x32xf32>
    %333 = arith.mulf %327, %332 : vector<8x32xf32>
    %334 = arith.addf %329, %333 : vector<8x32xf32>
    %335 = math.tanh %334 : vector<8x32xf32>
    %336 = arith.subf %309, %335 : vector<8x32xf32>
    %337 = arith.mulf %328, %336 : vector<8x32xf32>
    %338 = arith.addf %335, %337 : vector<8x32xf32>
    %339 = arith.index_cast %c2_i32_92 : i32 to index
    %c0_97 = arith.constant 0 : index
    %c0_98 = arith.constant 0 : index
    %340 = vector.load %arg11[%339, %c0_97, %c0_98] : memref<8x8x32xf32, #tpu.memory_space<vmem>>, vector<1x8x32xf32>
    %341 = vector.shape_cast %340 : vector<1x8x32xf32> to vector<8x32xf32>
    %342 = vector.shape_cast %338 : vector<8x32xf32> to vector<1x8x32xf32>
    tpu.vector_store %arg11[%339, %c0_97, %c0_98], %342 {strides = array<i32>} : memref<8x8x32xf32, #tpu.memory_space<vmem>>, vector<1x8x32xf32>,
    %c3_i32_99 = arith.constant 3 : i32
    %343 = arith.index_cast %c3_i32_99 : i32 to index
    %c0_100 = arith.constant 0 : index
    %c0_101 = arith.constant 0 : index
    %344 = vector.load %arg10[%343, %c0_100, %c0_101] : memref<8x8x96xf32, #tpu.memory_space<vmem>>, vector<1x8x96xf32>
    %345 = vector.shape_cast %344 : vector<1x8x96xf32> to vector<8x96xf32>
    %346 = arith.truncf %338 : vector<8x32xf32> to vector<8x32xbf16>
    %cst_102 = arith.constant dense<0.000000e+00> : vector<8x96xf32>
    %347 = tpu.matmul %346, %253, %cst_102 {dimension_numbers = #tpu.dot_dimension_numbers<[1], [0], [0], [1], [0, 0, 1, 1], [], []>} : vector<8x32xbf16>, vector<32x96xbf16>, vector<8x96xf32> -> vector<8x96xf32>
    %348 = vector.extract_strided_slice %345 {offsets = [0, 0], sizes = [8, 64], strides = [1, 1]} : vector<8x96xf32> to vector<8x64xf32>
    %349 = vector.extract_strided_slice %347 {offsets = [0, 0], sizes = [8, 64], strides = [1, 1]} : vector<8x96xf32> to vector<8x64xf32>
    %350 = arith.addf %348, %349 : vector<8x64xf32>
    %351 = arith.negf %350 : vector<8x64xf32>
    %352 = math.exp %351 : vector<8x64xf32>
    %cst_103 = arith.constant 1.000000e+00 : f32
    %353 = vector.broadcast %cst_103 : f32 to vector<8x64xf32>
    %354 = arith.addf %353, %352 : vector<8x64xf32>
    %355 = arith.divf %353, %354 : vector<8x64xf32>
    %356 = vector.extract_strided_slice %355 {offsets = [0, 0], sizes = [8, 32], strides = [1, 1]} : vector<8x64xf32> to vector<8x32xf32>
    %357 = vector.extract_strided_slice %355 {offsets = [0, 32], sizes = [8, 32], strides = [1, 1]} : vector<8x64xf32> to vector<8x32xf32>
    %358 = vector.extract_strided_slice %345 {offsets = [0, 64], sizes = [8, 32], strides = [1, 1]} : vector<8x96xf32> to vector<8x32xf32>
    %359 = vector.extract_strided_slice %347 {offsets = [0, 64], sizes = [8, 32], strides = [1, 1]} : vector<8x96xf32> to vector<8x32xf32>
    %360 = vector.broadcast %254 : vector<1x32xf32> to vector<8x32xf32>
    %361 = arith.addf %359, %360 : vector<8x32xf32>
    %362 = arith.mulf %356, %361 : vector<8x32xf32>
    %363 = arith.addf %358, %362 : vector<8x32xf32>
    %364 = math.tanh %363 : vector<8x32xf32>
    %365 = arith.subf %338, %364 : vector<8x32xf32>
    %366 = arith.mulf %357, %365 : vector<8x32xf32>
    %367 = arith.addf %364, %366 : vector<8x32xf32>
    %368 = arith.index_cast %c3_i32_99 : i32 to index
    %c0_104 = arith.constant 0 : index
    %c0_105 = arith.constant 0 : index
    %369 = vector.load %arg11[%368, %c0_104, %c0_105] : memref<8x8x32xf32, #tpu.memory_space<vmem>>, vector<1x8x32xf32>
    %370 = vector.shape_cast %369 : vector<1x8x32xf32> to vector<8x32xf32>
    %371 = vector.shape_cast %367 : vector<8x32xf32> to vector<1x8x32xf32>
    tpu.vector_store %arg11[%368, %c0_104, %c0_105], %371 {strides = array<i32>} : memref<8x8x32xf32, #tpu.memory_space<vmem>>, vector<1x8x32xf32>,
    %c4_i32_106 = arith.constant 4 : i32
    %372 = arith.index_cast %c4_i32_106 : i32 to index
    %c0_107 = arith.constant 0 : index
    %c0_108 = arith.constant 0 : index
    %373 = vector.load %arg10[%372, %c0_107, %c0_108] : memref<8x8x96xf32, #tpu.memory_space<vmem>>, vector<1x8x96xf32>
    %374 = vector.shape_cast %373 : vector<1x8x96xf32> to vector<8x96xf32>
    %375 = arith.truncf %367 : vector<8x32xf32> to vector<8x32xbf16>
    %cst_109 = arith.constant dense<0.000000e+00> : vector<8x96xf32>
    %376 = tpu.matmul %375, %253, %cst_109 {dimension_numbers = #tpu.dot_dimension_numbers<[1], [0], [0], [1], [0, 0, 1, 1], [], []>} : vector<8x32xbf16>, vector<32x96xbf16>, vector<8x96xf32> -> vector<8x96xf32>
    %377 = vector.extract_strided_slice %374 {offsets = [0, 0], sizes = [8, 64], strides = [1, 1]} : vector<8x96xf32> to vector<8x64xf32>
    %378 = vector.extract_strided_slice %376 {offsets = [0, 0], sizes = [8, 64], strides = [1, 1]} : vector<8x96xf32> to vector<8x64xf32>
    %379 = arith.addf %377, %378 : vector<8x64xf32>
    %380 = arith.negf %379 : vector<8x64xf32>
    %381 = math.exp %380 : vector<8x64xf32>
    %cst_110 = arith.constant 1.000000e+00 : f32
    %382 = vector.broadcast %cst_110 : f32 to vector<8x64xf32>
    %383 = arith.addf %382, %381 : vector<8x64xf32>
    %384 = arith.divf %382, %383 : vector<8x64xf32>
    %385 = vector.extract_strided_slice %384 {offsets = [0, 0], sizes = [8, 32], strides = [1, 1]} : vector<8x64xf32> to vector<8x32xf32>
    %386 = vector.extract_strided_slice %384 {offsets = [0, 32], sizes = [8, 32], strides = [1, 1]} : vector<8x64xf32> to vector<8x32xf32>
    %387 = vector.extract_strided_slice %374 {offsets = [0, 64], sizes = [8, 32], strides = [1, 1]} : vector<8x96xf32> to vector<8x32xf32>
    %388 = vector.extract_strided_slice %376 {offsets = [0, 64], sizes = [8, 32], strides = [1, 1]} : vector<8x96xf32> to vector<8x32xf32>
    %389 = vector.broadcast %254 : vector<1x32xf32> to vector<8x32xf32>
    %390 = arith.addf %388, %389 : vector<8x32xf32>
    %391 = arith.mulf %385, %390 : vector<8x32xf32>
    %392 = arith.addf %387, %391 : vector<8x32xf32>
    %393 = math.tanh %392 : vector<8x32xf32>
    %394 = arith.subf %367, %393 : vector<8x32xf32>
    %395 = arith.mulf %386, %394 : vector<8x32xf32>
    %396 = arith.addf %393, %395 : vector<8x32xf32>
    %397 = arith.index_cast %c4_i32_106 : i32 to index
    %c0_111 = arith.constant 0 : index
    %c0_112 = arith.constant 0 : index
    %398 = vector.load %arg11[%397, %c0_111, %c0_112] : memref<8x8x32xf32, #tpu.memory_space<vmem>>, vector<1x8x32xf32>
    %399 = vector.shape_cast %398 : vector<1x8x32xf32> to vector<8x32xf32>
    %400 = vector.shape_cast %396 : vector<8x32xf32> to vector<1x8x32xf32>
    tpu.vector_store %arg11[%397, %c0_111, %c0_112], %400 {strides = array<i32>} : memref<8x8x32xf32, #tpu.memory_space<vmem>>, vector<1x8x32xf32>,
    %c5_i32_113 = arith.constant 5 : i32
    %401 = arith.index_cast %c5_i32_113 : i32 to index
    %c0_114 = arith.constant 0 : index
    %c0_115 = arith.constant 0 : index
    %402 = vector.load %arg10[%401, %c0_114, %c0_115] : memref<8x8x96xf32, #tpu.memory_space<vmem>>, vector<1x8x96xf32>
    %403 = vector.shape_cast %402 : vector<1x8x96xf32> to vector<8x96xf32>
    %404 = arith.truncf %396 : vector<8x32xf32> to vector<8x32xbf16>
    %cst_116 = arith.constant dense<0.000000e+00> : vector<8x96xf32>
    %405 = tpu.matmul %404, %253, %cst_116 {dimension_numbers = #tpu.dot_dimension_numbers<[1], [0], [0], [1], [0, 0, 1, 1], [], []>} : vector<8x32xbf16>, vector<32x96xbf16>, vector<8x96xf32> -> vector<8x96xf32>
    %406 = vector.extract_strided_slice %403 {offsets = [0, 0], sizes = [8, 64], strides = [1, 1]} : vector<8x96xf32> to vector<8x64xf32>
    %407 = vector.extract_strided_slice %405 {offsets = [0, 0], sizes = [8, 64], strides = [1, 1]} : vector<8x96xf32> to vector<8x64xf32>
    %408 = arith.addf %406, %407 : vector<8x64xf32>
    %409 = arith.negf %408 : vector<8x64xf32>
    %410 = math.exp %409 : vector<8x64xf32>
    %cst_117 = arith.constant 1.000000e+00 : f32
    %411 = vector.broadcast %cst_117 : f32 to vector<8x64xf32>
    %412 = arith.addf %411, %410 : vector<8x64xf32>
    %413 = arith.divf %411, %412 : vector<8x64xf32>
    %414 = vector.extract_strided_slice %413 {offsets = [0, 0], sizes = [8, 32], strides = [1, 1]} : vector<8x64xf32> to vector<8x32xf32>
    %415 = vector.extract_strided_slice %413 {offsets = [0, 32], sizes = [8, 32], strides = [1, 1]} : vector<8x64xf32> to vector<8x32xf32>
    %416 = vector.extract_strided_slice %403 {offsets = [0, 64], sizes = [8, 32], strides = [1, 1]} : vector<8x96xf32> to vector<8x32xf32>
    %417 = vector.extract_strided_slice %405 {offsets = [0, 64], sizes = [8, 32], strides = [1, 1]} : vector<8x96xf32> to vector<8x32xf32>
    %418 = vector.broadcast %254 : vector<1x32xf32> to vector<8x32xf32>
    %419 = arith.addf %417, %418 : vector<8x32xf32>
    %420 = arith.mulf %414, %419 : vector<8x32xf32>
    %421 = arith.addf %416, %420 : vector<8x32xf32>
    %422 = math.tanh %421 : vector<8x32xf32>
    %423 = arith.subf %396, %422 : vector<8x32xf32>
    %424 = arith.mulf %415, %423 : vector<8x32xf32>
    %425 = arith.addf %422, %424 : vector<8x32xf32>
    %426 = arith.index_cast %c5_i32_113 : i32 to index
    %c0_118 = arith.constant 0 : index
    %c0_119 = arith.constant 0 : index
    %427 = vector.load %arg11[%426, %c0_118, %c0_119] : memref<8x8x32xf32, #tpu.memory_space<vmem>>, vector<1x8x32xf32>
    %428 = vector.shape_cast %427 : vector<1x8x32xf32> to vector<8x32xf32>
    %429 = vector.shape_cast %425 : vector<8x32xf32> to vector<1x8x32xf32>
    tpu.vector_store %arg11[%426, %c0_118, %c0_119], %429 {strides = array<i32>} : memref<8x8x32xf32, #tpu.memory_space<vmem>>, vector<1x8x32xf32>,
    %c6_i32_120 = arith.constant 6 : i32
    %430 = arith.index_cast %c6_i32_120 : i32 to index
    %c0_121 = arith.constant 0 : index
    %c0_122 = arith.constant 0 : index
    %431 = vector.load %arg10[%430, %c0_121, %c0_122] : memref<8x8x96xf32, #tpu.memory_space<vmem>>, vector<1x8x96xf32>
    %432 = vector.shape_cast %431 : vector<1x8x96xf32> to vector<8x96xf32>
    %433 = arith.truncf %425 : vector<8x32xf32> to vector<8x32xbf16>
    %cst_123 = arith.constant dense<0.000000e+00> : vector<8x96xf32>
    %434 = tpu.matmul %433, %253, %cst_123 {dimension_numbers = #tpu.dot_dimension_numbers<[1], [0], [0], [1], [0, 0, 1, 1], [], []>} : vector<8x32xbf16>, vector<32x96xbf16>, vector<8x96xf32> -> vector<8x96xf32>
    %435 = vector.extract_strided_slice %432 {offsets = [0, 0], sizes = [8, 64], strides = [1, 1]} : vector<8x96xf32> to vector<8x64xf32>
    %436 = vector.extract_strided_slice %434 {offsets = [0, 0], sizes = [8, 64], strides = [1, 1]} : vector<8x96xf32> to vector<8x64xf32>
    %437 = arith.addf %435, %436 : vector<8x64xf32>
    %438 = arith.negf %437 : vector<8x64xf32>
    %439 = math.exp %438 : vector<8x64xf32>
    %cst_124 = arith.constant 1.000000e+00 : f32
    %440 = vector.broadcast %cst_124 : f32 to vector<8x64xf32>
    %441 = arith.addf %440, %439 : vector<8x64xf32>
    %442 = arith.divf %440, %441 : vector<8x64xf32>
    %443 = vector.extract_strided_slice %442 {offsets = [0, 0], sizes = [8, 32], strides = [1, 1]} : vector<8x64xf32> to vector<8x32xf32>
    %444 = vector.extract_strided_slice %442 {offsets = [0, 32], sizes = [8, 32], strides = [1, 1]} : vector<8x64xf32> to vector<8x32xf32>
    %445 = vector.extract_strided_slice %432 {offsets = [0, 64], sizes = [8, 32], strides = [1, 1]} : vector<8x96xf32> to vector<8x32xf32>
    %446 = vector.extract_strided_slice %434 {offsets = [0, 64], sizes = [8, 32], strides = [1, 1]} : vector<8x96xf32> to vector<8x32xf32>
    %447 = vector.broadcast %254 : vector<1x32xf32> to vector<8x32xf32>
    %448 = arith.addf %446, %447 : vector<8x32xf32>
    %449 = arith.mulf %443, %448 : vector<8x32xf32>
    %450 = arith.addf %445, %449 : vector<8x32xf32>
    %451 = math.tanh %450 : vector<8x32xf32>
    %452 = arith.subf %425, %451 : vector<8x32xf32>
    %453 = arith.mulf %444, %452 : vector<8x32xf32>
    %454 = arith.addf %451, %453 : vector<8x32xf32>
    %455 = arith.index_cast %c6_i32_120 : i32 to index
    %c0_125 = arith.constant 0 : index
    %c0_126 = arith.constant 0 : index
    %456 = vector.load %arg11[%455, %c0_125, %c0_126] : memref<8x8x32xf32, #tpu.memory_space<vmem>>, vector<1x8x32xf32>
    %457 = vector.shape_cast %456 : vector<1x8x32xf32> to vector<8x32xf32>
    %458 = vector.shape_cast %454 : vector<8x32xf32> to vector<1x8x32xf32>
    tpu.vector_store %arg11[%455, %c0_125, %c0_126], %458 {strides = array<i32>} : memref<8x8x32xf32, #tpu.memory_space<vmem>>, vector<1x8x32xf32>,
    %c7_i32_127 = arith.constant 7 : i32
    %459 = arith.index_cast %c7_i32_127 : i32 to index
    %c0_128 = arith.constant 0 : index
    %c0_129 = arith.constant 0 : index
    %460 = vector.load %arg10[%459, %c0_128, %c0_129] : memref<8x8x96xf32, #tpu.memory_space<vmem>>, vector<1x8x96xf32>
    %461 = vector.shape_cast %460 : vector<1x8x96xf32> to vector<8x96xf32>
    %462 = arith.truncf %454 : vector<8x32xf32> to vector<8x32xbf16>
    %cst_130 = arith.constant dense<0.000000e+00> : vector<8x96xf32>
    %463 = tpu.matmul %462, %253, %cst_130 {dimension_numbers = #tpu.dot_dimension_numbers<[1], [0], [0], [1], [0, 0, 1, 1], [], []>} : vector<8x32xbf16>, vector<32x96xbf16>, vector<8x96xf32> -> vector<8x96xf32>
    %464 = vector.extract_strided_slice %461 {offsets = [0, 0], sizes = [8, 64], strides = [1, 1]} : vector<8x96xf32> to vector<8x64xf32>
    %465 = vector.extract_strided_slice %463 {offsets = [0, 0], sizes = [8, 64], strides = [1, 1]} : vector<8x96xf32> to vector<8x64xf32>
    %466 = arith.addf %464, %465 : vector<8x64xf32>
    %467 = arith.negf %466 : vector<8x64xf32>
    %468 = math.exp %467 : vector<8x64xf32>
    %cst_131 = arith.constant 1.000000e+00 : f32
    %469 = vector.broadcast %cst_131 : f32 to vector<8x64xf32>
    %470 = arith.addf %469, %468 : vector<8x64xf32>
    %471 = arith.divf %469, %470 : vector<8x64xf32>
    %472 = vector.extract_strided_slice %471 {offsets = [0, 0], sizes = [8, 32], strides = [1, 1]} : vector<8x64xf32> to vector<8x32xf32>
    %473 = vector.extract_strided_slice %471 {offsets = [0, 32], sizes = [8, 32], strides = [1, 1]} : vector<8x64xf32> to vector<8x32xf32>
    %474 = vector.extract_strided_slice %461 {offsets = [0, 64], sizes = [8, 32], strides = [1, 1]} : vector<8x96xf32> to vector<8x32xf32>
    %475 = vector.extract_strided_slice %463 {offsets = [0, 64], sizes = [8, 32], strides = [1, 1]} : vector<8x96xf32> to vector<8x32xf32>
    %476 = vector.broadcast %254 : vector<1x32xf32> to vector<8x32xf32>
    %477 = arith.addf %475, %476 : vector<8x32xf32>
    %478 = arith.mulf %472, %477 : vector<8x32xf32>
    %479 = arith.addf %474, %478 : vector<8x32xf32>
    %480 = math.tanh %479 : vector<8x32xf32>
    %481 = arith.subf %454, %480 : vector<8x32xf32>
    %482 = arith.mulf %473, %481 : vector<8x32xf32>
    %483 = arith.addf %480, %482 : vector<8x32xf32>
    %484 = arith.index_cast %c7_i32_127 : i32 to index
    %c0_132 = arith.constant 0 : index
    %c0_133 = arith.constant 0 : index
    %485 = vector.load %arg11[%484, %c0_132, %c0_133] : memref<8x8x32xf32, #tpu.memory_space<vmem>>, vector<1x8x32xf32>
    %486 = vector.shape_cast %485 : vector<1x8x32xf32> to vector<8x32xf32>
    %487 = vector.shape_cast %483 : vector<8x32xf32> to vector<1x8x32xf32>
    tpu.vector_store %arg11[%484, %c0_132, %c0_133], %487 {strides = array<i32>} : memref<8x8x32xf32, #tpu.memory_space<vmem>>, vector<1x8x32xf32>,
    %c8_i32_134 = arith.constant 8 : i32
    %c0_135 = arith.constant 0 : index
    %c0_136 = arith.constant 0 : index
    %c0_137 = arith.constant 0 : index
    %488 = vector.load %arg11[%c0_135, %c0_136, %c0_137] : memref<8x8x32xf32, #tpu.memory_space<vmem>>, vector<8x8x32xf32>
    %cst_138 = arith.constant dense<0.000000e+00> : vector<8x32xf32>
    %489 = vector.multi_reduction <add>, %488, %cst_138 [1] : vector<8x8x32xf32> to vector<8x32xf32>
    %cst_139 = arith.constant 8.000000e+00 : f32
    %490 = vector.broadcast %cst_139 : f32 to vector<8x32xf32>
    %491 = arith.divf %489, %490 : vector<8x32xf32>
    %c0_140 = arith.constant 0 : index
    %c0_141 = arith.constant 0 : index
    %492 = vector.load %arg9[%c0_140, %c0_141] : memref<8x32xf32, #tpu.memory_space<vmem>>, vector<8x32xf32>
    tpu.vector_store %arg9[%c0_140, %c0_141], %491 {strides = array<i32>} : memref<8x32xf32, #tpu.memory_space<vmem>>, vector<8x32xf32>,
    return
  }
}

</mosaic_0001>

<llo_original>
// kernel: tpu_custom_call.1
$region0: #{tpu_custom_call.1}
  #allocation0 [shape = 'u32[]', space=smem, size = 0x4, offset = 0x4, fixed_abs, tag = 'smem constant byte address 0x4 - core index']
  #allocation1 [shape = 'u32[72,128]{1,0:T(1,128)}', space=vmem, size = 0x9000, scoped, tag = 'internal scratch']
  #allocation2 [shape = 'f32[8,8,96]{2,1,0:T(8,128)}', space=vmem, size = 0x8000, scoped, tag = 'scratch operand']
  #allocation3 [shape = 'f32[8,8,32]{2,1,0:T(8,128)}', space=vmem, size = 0x8000, scoped, tag = 'scratch operand']
  %s0 = inlined_call_operand.hbm [shape: f32[8,8,192], index: 0, kind: input, shape index: {}]
  %s1 = inlined_call_operand.hbm [shape: f32[192,96], index: 1, kind: input, shape index: {}]
  %s2 = inlined_call_operand.hbm [shape: bf16[32,96], index: 2, kind: input, shape index: {}]
  %s3 = inlined_call_operand.vmem [shape: f32[1,96], index: 3, kind: input, shape index: {}]
  %s4 = inlined_call_operand.vmem [shape: f32[1,32], index: 4, kind: input, shape index: {}]
  %s5 = inlined_call_operand.hbm [shape: f32[32,96], index: 5, kind: input, shape index: {}]
  %s6 = inlined_call_operand.hbm [shape: bf16[32,96], index: 6, kind: input, shape index: {}]
  %s7 = inlined_call_operand.vmem [shape: f32[1,96], index: 7, kind: input, shape index: {}]
  %s8 = inlined_call_operand.vmem [shape: f32[1,32], index: 8, kind: input, shape index: {}]
  %s9 = inlined_call_operand.hbm [shape: f32[8,32], index: 9, kind: output, shape index: {}]
  %s10 = sld [smem:[#allocation0]]
  $region66: #{tpu_custom_call.1} parent=0
    _
  %s12 = ssub.s32 1, %s10
  %s13 = scalar_select 0, %s12, %s10
  $region1: #{tpu_custom_call.1} parent=0
    #allocation4 [shape = 'u8[65536]{0}', space=vmem, size = 0x10000, scoped, tag = 'input window, operand 0, single buffered']
    #allocation5 [shape = 's32[1]{0}', space=sflag, size = 0x4, scoped, tag = 'scoped memory for tpu_custom_call.1']
    #allocation6 [shape = 's32[1]{0}', space=sflag, size = 0x4, scoped, tag = 'scoped memory for tpu_custom_call.1']
    #allocation7 [shape = 'u8[98304]{0}', space=vmem, size = 0x18000, scoped, tag = 'input window, operand 1, single buffered']
    #allocation8 [shape = 's32[1]{0}', space=sflag, size = 0x4, scoped, tag = 'scoped memory for tpu_custom_call.1']
    #allocation9 [shape = 'u8[8192]{0}', space=vmem, size = 0x2000, scoped, tag = 'input window, operand 2, single buffered']
    #allocation10 [shape = 'u8[16384]{0}', space=vmem, size = 0x4000, scoped, tag = 'input window, operand 5, single buffered']
    #allocation11 [shape = 's32[1]{0}', space=sflag, size = 0x4, scoped, tag = 'scoped memory for tpu_custom_call.1']
    #allocation12 [shape = 'u8[8192]{0}', space=vmem, size = 0x2000, scoped, tag = 'input window, operand 6, single buffered']
    #allocation13 [shape = 'u8[4096]{0}', space=vmem, size = 0x1000, scoped, tag = 'output window, operand 0, single buffered']
    %14 = vsyncpa [#allocation5], 0
    %15 = vsyncpa [#allocation8], 0
    %16 = vsyncpa [#allocation11], 0
    %17 = vsyncpa [#allocation6], 0
    // Predicated region
    $region2: #{tpu_custom_call.1} parent=1 // pred_check
      _
    $region3: #{tpu_custom_call.1} parent=1 // pred_check_branch
      %19 = sbr.rel (0) target = $region5
    $region4: #{tpu_custom_call.1} parent=1 // pred_region
      %21 = vsyncadd [#allocation5], 0
      %s22 = sshll.u32 %s0, 4
      %s23 = int_to_ptr.hbm [resolvable:$true] %s22
      %s24 = sshll.u32 [#allocation4], 4
      %s25 = int_to_ptr.vmem [resolvable:$true] %s24
      %30 = dma.hbm_to_vmem [thread:$0]  %s23, 2048, %s25, [#allocation5], 256, 256, 16
    $region5: #{tpu_custom_call.1} parent=1 // pred_fallthru
      _
    // Predicated region
    $region6: #{tpu_custom_call.1} parent=1 // pred_check
      _
    $region7: #{tpu_custom_call.1} parent=1 // pred_check_branch
      %32 = sbr.rel (0) target = $region9
    $region8: #{tpu_custom_call.1} parent=1 // pred_region
      %34 = vsyncadd [#allocation8], 0
      %s35 = sshll.u32 %s1, 4
      %s36 = int_to_ptr.hbm [resolvable:$true] %s35
      %s37 = sshll.u32 [#allocation7], 4
      %s38 = int_to_ptr.vmem [resolvable:$true] %s37
      %43 = dma.hbm_to_vmem [thread:$0]  %s36, 3072, %s38, [#allocation8], 128, 128, 8
    $region9: #{tpu_custom_call.1} parent=1 // pred_fallthru
      _
    // Predicated region
    $region10: #{tpu_custom_call.1} parent=1 // pred_check
      _
    $region11: #{tpu_custom_call.1} parent=1 // pred_check_branch
      %45 = sbr.rel (0) target = $region13
    $region12: #{tpu_custom_call.1} parent=1 // pred_region
      %47 = vsyncadd [#allocation8], 0
      %s48 = sshll.u32 %s2, 4
      %s49 = int_to_ptr.hbm [resolvable:$true] %s48
      %s50 = sshll.u32 [#allocation9], 4
      %s51 = int_to_ptr.vmem [resolvable:$true] %s50
      %56 = dma.hbm_to_vmem [thread:$0]  %s49, 256, %s51, [#allocation8], 64, 64, 4
    $region13: #{tpu_custom_call.1} parent=1 // pred_fallthru
      _
    // Predicated region
    $region14: #{tpu_custom_call.1} parent=1 // pred_check
      _
    $region15: #{tpu_custom_call.1} parent=1 // pred_check_branch
      %58 = sbr.rel (0) target = $region17
    $region16: #{tpu_custom_call.1} parent=1 // pred_region
      _
    $region17: #{tpu_custom_call.1} parent=1 // pred_fallthru
      _
    // Predicated region
    $region18: #{tpu_custom_call.1} parent=1 // pred_check
      _
    $region19: #{tpu_custom_call.1} parent=1 // pred_check_branch
      %60 = sbr.rel (0) target = $region21
    $region20: #{tpu_custom_call.1} parent=1 // pred_region
      _
    $region21: #{tpu_custom_call.1} parent=1 // pred_fallthru
      _
    // Predicated region
    $region22: #{tpu_custom_call.1} parent=1 // pred_check
      _
    $region23: #{tpu_custom_call.1} parent=1 // pred_check_branch
      %62 = sbr.rel (0) target = $region25
    $region24: #{tpu_custom_call.1} parent=1 // pred_region
      %64 = vsyncadd [#allocation11], 0
      %s65 = sshll.u32 %s5, 4
      %s66 = int_to_ptr.hbm [resolvable:$true] %s65
      %s67 = sshll.u32 [#allocation10], 4
      %s68 = int_to_ptr.vmem [resolvable:$true] %s67
      %73 = dma.hbm_to_vmem [thread:$0]  %s66, 512, %s68, [#allocation11], 128, 128, 8
    $region25: #{tpu_custom_call.1} parent=1 // pred_fallthru
      _
    // Predicated region
    $region26: #{tpu_custom_call.1} parent=1 // pred_check
      _
    $region27: #{tpu_custom_call.1} parent=1 // pred_check_branch
      %75 = sbr.rel (0) target = $region29
    $region28: #{tpu_custom_call.1} parent=1 // pred_region
      %77 = vsyncadd [#allocation11], 0
      %s78 = sshll.u32 %s6, 4
      %s79 = int_to_ptr.hbm [resolvable:$true] %s78
      %s80 = sshll.u32 [#allocation12], 4
      %s81 = int_to_ptr.vmem [resolvable:$true] %s80
      %86 = dma.hbm_to_vmem [thread:$0]  %s79, 256, %s81, [#allocation11], 64, 64, 4
    $region29: #{tpu_custom_call.1} parent=1 // pred_fallthru
      _
    // Predicated region
    $region30: #{tpu_custom_call.1} parent=1 // pred_check
      _
    $region31: #{tpu_custom_call.1} parent=1 // pred_check_branch
      %88 = sbr.rel (0) target = $region33
    $region32: #{tpu_custom_call.1} parent=1 // pred_region
      _
    $region33: #{tpu_custom_call.1} parent=1 // pred_fallthru
      _
    // Predicated region
    $region34: #{tpu_custom_call.1} parent=1 // pred_check
      _
    $region35: #{tpu_custom_call.1} parent=1 // pred_check_branch
      %90 = sbr.rel (0) target = $region37
    $region36: #{tpu_custom_call.1} parent=1 // pred_region
      _
    $region37: #{tpu_custom_call.1} parent=1 // pred_fallthru
      _
    // Predicated region
    $region38: #{tpu_custom_call.1} parent=1 // pred_check
      _
    $region39: #{tpu_custom_call.1} parent=1 // pred_check_branch
      %92 = sbr.rel (0) target = $region41
    $region40: #{tpu_custom_call.1} parent=1 // pred_region
      %94 = dma.done [#allocation5], 2048
    $region41: #{tpu_custom_call.1} parent=1 // pred_fallthru
      _
    // Predicated region
    $region42: #{tpu_custom_call.1} parent=1 // pred_check
      _
    $region43: #{tpu_custom_call.1} parent=1 // pred_check_branch
      %96 = sbr.rel (0) target = $region45
    $region44: #{tpu_custom_call.1} parent=1 // pred_region
      %98 = dma.done [#allocation8], 3072
    $region45: #{tpu_custom_call.1} parent=1 // pred_fallthru
      _
    // Predicated region
    $region46: #{tpu_custom_call.1} parent=1 // pred_check
      _
    $region47: #{tpu_custom_call.1} parent=1 // pred_check_branch
      %100 = sbr.rel (0) target = $region49
    $region48: #{tpu_custom_call.1} parent=1 // pred_region
      %102 = dma.done [#allocation8], 256
    $region49: #{tpu_custom_call.1} parent=1 // pred_fallthru
      _
    // Predicated region
    $region50: #{tpu_custom_call.1} parent=1 // pred_check
      _
    $region51: #{tpu_custom_call.1} parent=1 // pred_check_branch
      %104 = sbr.rel (0) target = $region53
    $region52: #{tpu_custom_call.1} parent=1 // pred_region
      %106 = dma.done [#allocation11], 512
    $region53: #{tpu_custom_call.1} parent=1 // pred_fallthru
      _
    // Predicated region
    $region54: #{tpu_custom_call.1} parent=1 // pred_check
      _
    $region55: #{tpu_custom_call.1} parent=1 // pred_check_branch
      %108 = sbr.rel (0) target = $region57
    $region56: #{tpu_custom_call.1} parent=1 // pred_region
      %110 = dma.done [#allocation11], 256
    $region57: #{tpu_custom_call.1} parent=1 // pred_fallthru
      _
    %v112 = vld [vmem:[%s3] sm:$0x1]
    %v113 = vld [vmem:[#allocation7] sm:$0xff]
    %v114 = vld [vmem:[#allocation7 + $0x8] sm:$0xff]
    %v115 = vld [vmem:[#allocation7 + $0x10] sm:$0xff]
    %v116 = vld [vmem:[#allocation7 + $0x18] sm:$0xff]
    %v117 = vld [vmem:[#allocation7 + $0x20] sm:$0xff]
    %v118 = vld [vmem:[#allocation7 + $0x28] sm:$0xff]
    %v119 = vld [vmem:[#allocation7 + $0x30] sm:$0xff]
    %v120 = vld [vmem:[#allocation7 + $0x38] sm:$0xff]
    %v121 = vld [vmem:[#allocation7 + $0x40] sm:$0xff]
    %v122 = vld [vmem:[#allocation7 + $0x48] sm:$0xff]
    %v123 = vld [vmem:[#allocation7 + $0x50] sm:$0xff]
    %v124 = vld [vmem:[#allocation7 + $0x58] sm:$0xff]
    %v125 = vld [vmem:[#allocation7 + $0x60] sm:$0xff]
    %v126 = vld [vmem:[#allocation7 + $0x68] sm:$0xff]
    %v127 = vld [vmem:[#allocation7 + $0x70] sm:$0xff]
    %v128 = vld [vmem:[#allocation7 + $0x78] sm:$0xff]
    %v129 = vld [vmem:[#allocation7 + $0x80] sm:$0xff]
    %v130 = vld [vmem:[#allocation7 + $0x88] sm:$0xff]
    %v131 = vld [vmem:[#allocation7 + $0x90] sm:$0xff]
    %v132 = vld [vmem:[#allocation7 + $0x98] sm:$0xff]
    %v133 = vld [vmem:[#allocation7 + $0xa0] sm:$0xff]
    %v134 = vld [vmem:[#allocation7 + $0xa8] sm:$0xff]
    %v135 = vld [vmem:[#allocation7 + $0xb0] sm:$0xff]
    %v136 = vld [vmem:[#allocation7 + $0xb8] sm:$0xff]
    %v137 = vld [vmem:[#allocation4] sm:$0xff]
    %v138 = vld [vmem:[#allocation4 + $0x8] sm:$0xff]
    %v139 = vld [vmem:[#allocation4 + $0x10] sm:$0xff]
    %v140 = vld [vmem:[#allocation4 + $0x18] sm:$0xff]
    %v141 = vld [vmem:[#allocation4 + $0x20] sm:$0xff]
    %v142 = vld [vmem:[#allocation4 + $0x28] sm:$0xff]
    %v143 = vld [vmem:[#allocation4 + $0x30] sm:$0xff]
    %v144 = vld [vmem:[#allocation4 + $0x38] sm:$0xff]
    %v145 = vld [vmem:[#allocation4 + $0x40] sm:$0xff]
    %v146 = vld [vmem:[#allocation4 + $0x48] sm:$0xff]
    %v147 = vld [vmem:[#allocation4 + $0x50] sm:$0xff]
    %v148 = vld [vmem:[#allocation4 + $0x58] sm:$0xff]
    %v149 = vld [vmem:[#allocation4 + $0x60] sm:$0xff]
    %v150 = vld [vmem:[#allocation4 + $0x68] sm:$0xff]
    %v151 = vld [vmem:[#allocation4 + $0x70] sm:$0xff]
    %v152 = vld [vmem:[#allocation4 + $0x78] sm:$0xff]
    %v154 = vperm.slane %v112, 0
    %vm156 = vcmask 523264
    %v158 = vsel %vm156, %v138, 0
    %v161 = vsel %vm156, %v140, 0
    %v164 = vsel %vm156, %v142, 0
    %v167 = vsel %vm156, %v144, 0
    %v170 = vsel %vm156, %v146, 0
    %v173 = vsel %vm156, %v148, 0
    %v176 = vsel %vm156, %v150, 0
    %v179 = vsel %vm156, %v152, 0
    %181 = vmatpush.msra.mxu0 %v128
    %182 = vmatpush.msra.mxu0 %v127
    %183 = vmatpush.msra.mxu0 %v126
    %184 = vmatpush.msra.mxu0 %v125
    %185 = vmatpush.msra.mxu0 %v124
    %186 = vmatpush.msra.mxu0 %v123
    %187 = vmatpush.msra.mxu0 %v122
    %188 = vmatpush.msra.mxu0 %v121
    %189 = vmatpush.msra.mxu0 %v120
    %190 = vmatpush.msra.mxu0 %v119
    %191 = vmatpush.msra.mxu0 %v118
    %192 = vmatpush.msra.mxu0 %v117
    %193 = vmatpush.msra.mxu0 %v116
    %194 = vmatpush.msra.mxu0 %v115
    %195 = vmatpush.msra.mxu0 %v114
    %196 = vmatpush.msra.mxu0 %v113
    %197 = vmatmul.f32.gmra.mxu0 %v137
    %v198 = vpop.f32.mrf.mxu0
    %v199 = vadd.f32 %v154, %v198
    %200 = vmatmul.f32.gmra.mxu0 %v139
    %v201 = vpop.f32.mrf.mxu0
    %v202 = vadd.f32 %v154, %v201
    %203 = vmatmul.f32.gmra.mxu0 %v141
    %v204 = vpop.f32.mrf.mxu0
    %v205 = vadd.f32 %v154, %v204
    %206 = vmatmul.f32.gmra.mxu0 %v143
    %v207 = vpop.f32.mrf.mxu0
    %v208 = vadd.f32 %v154, %v207
    %209 = vmatmul.f32.gmra.mxu0 %v145
    %v210 = vpop.f32.mrf.mxu0
    %v211 = vadd.f32 %v154, %v210
    %212 = vmatmul.f32.gmra.mxu0 %v147
    %v213 = vpop.f32.mrf.mxu0
    %v214 = vadd.f32 %v154, %v213
    %215 = vmatmul.f32.gmra.mxu0 %v149
    %v216 = vpop.f32.mrf.mxu0
    %v217 = vadd.f32 %v154, %v216
    %218 = vmatmul.f32.gmra.mxu0 %v151
    %v219 = vpop.f32.mrf.mxu0
    %v220 = vadd.f32 %v154, %v219
    %221 = vdwg.mxu0
    %222 = vmatpush.msra.mxu0 0.0
    %223 = vmatpush.msra.mxu0 0.0
    %224 = vmatpush.msra.mxu0 0.0
    %225 = vmatpush.msra.mxu0 0.0
    %226 = vmatpush.msra.mxu0 0.0
    %227 = vmatpush.msra.mxu0 0.0
    %228 = vmatpush.msra.mxu0 0.0
    %229 = vmatpush.msra.mxu0 0.0
    %230 = vmatpush.msra.mxu0 %v136
    %231 = vmatpush.msra.mxu0 %v135
    %232 = vmatpush.msra.mxu0 %v134
    %233 = vmatpush.msra.mxu0 %v133
    %234 = vmatpush.msra.mxu0 %v132
    %235 = vmatpush.msra.mxu0 %v131
    %236 = vmatpush.msra.mxu0 %v130
    %237 = vmatpush.msra.mxu0 %v129
    %238 = vmatmul.f32.gmra.mxu0 %v158
    %v239 = vpop.f32.mrf.mxu0
    %v240 = vadd.f32 %v199, %v239
    %241 = vmatmul.f32.gmra.mxu0 %v161
    %v242 = vpop.f32.mrf.mxu0
    %v243 = vadd.f32 %v202, %v242
    %244 = vmatmul.f32.gmra.mxu0 %v164
    %v245 = vpop.f32.mrf.mxu0
    %v246 = vadd.f32 %v205, %v245
    %247 = vmatmul.f32.gmra.mxu0 %v167
    %v248 = vpop.f32.mrf.mxu0
    %v249 = vadd.f32 %v208, %v248
    %250 = vmatmul.f32.gmra.mxu0 %v170
    %v251 = vpop.f32.mrf.mxu0
    %v252 = vadd.f32 %v211, %v251
    %253 = vmatmul.f32.gmra.mxu0 %v173
    %v254 = vpop.f32.mrf.mxu0
    %v255 = vadd.f32 %v214, %v254
    %256 = vmatmul.f32.gmra.mxu0 %v176
    %v257 = vpop.f32.mrf.mxu0
    %v258 = vadd.f32 %v217, %v257
    %259 = vmatmul.f32.gmra.mxu0 %v179
    %v260 = vpop.f32.mrf.mxu0
    %v261 = vadd.f32 %v220, %v260
    %262 = vdwg.mxu0
    %vm263 = vcmask 785408
    %264 = vst.msk [vmem:[#allocation2] sm:$0xff] %vm263, %v240
    %265 = vst.msk [vmem:[#allocation2 + $0x8] sm:$0xff] %vm263, %v243
    %266 = vst.msk [vmem:[#allocation2 + $0x10] sm:$0xff] %vm263, %v246
    %267 = vst.msk [vmem:[#allocation2 + $0x18] sm:$0xff] %vm263, %v249
    %268 = vst.msk [vmem:[#allocation2 + $0x20] sm:$0xff] %vm263, %v252
    %269 = vst.msk [vmem:[#allocation2 + $0x28] sm:$0xff] %vm263, %v255
    %270 = vst.msk [vmem:[#allocation2 + $0x30] sm:$0xff] %vm263, %v258
    %271 = vst.msk [vmem:[#allocation2 + $0x38] sm:$0xff] %vm263, %v261
    %v272 = vld [vmem:[#allocation9] sm:$0xf]
    %v273 = vld [vmem:[#allocation9 + $0x4] sm:$0xf]
    %v274 = vld [vmem:[#allocation9 + $0x8] sm:$0xf]
    %v275 = vld [vmem:[#allocation9 + $0xc] sm:$0xf]
    %v276 = vld [vmem:[%s4] sm:$0x1]
    %v277 = vld [vmem:[#allocation2] sm:$0xff]
    %v282 = vunpack.c.l.b16 %v272
    %v283 = vunpack.c.l.b16 %v273
    %v284 = vunpack.c.l.b16 %v274
    %v285 = vunpack.c.l.b16 %v275
    %v286 = vpack.c.b16 %v283, %v282
    %v287 = vpack.c.b16 %v285, %v284
    %vm290 = vcmask 261120
    %v292 = vsel %vm290, 0, 0
    %294 = vmatpush.bf16.msra.mxu0 0
    %295 = vmatpush.bf16.msra.mxu0 0
    %296 = vmatpush.bf16.msra.mxu0 0
    %297 = vmatpush.bf16.msra.mxu0 0
    %298 = vmatpush.bf16.msra.mxu0 0
    %299 = vmatpush.bf16.msra.mxu0 0
    %300 = vmatpush.bf16.msra.mxu0 %v287
    %301 = vmatpush.bf16.msra.mxu0 %v286
    %302 = vmatmul.bf16.gmra.mxu0 %v292
    %v303 = vpop.f32.mrf.mxu0
    %v304 = vadd.f32 0.0, %v303
    %v305 = vpop.f32.mrf.mxu0
    %306 = vdwg.mxu0
    %v307 = vadd.f32 %v277, %v304
    %v308 = vxor.u32 %v307, 2147483648
    %v309 = vmul.f32 %v308, 1.442695
    %v310 = vpow.pop %v309
    %v311 = vadd.f32 %v310, 1.0
    %v312 = vrcp.pop %v311
    %v313 = vmul.f32 %v311, %v312
    %v314 = vsub.f32 1.0, %v313
    %v315 = vmul.f32 %v312, %v314
    %v316 = vadd.f32 %v312, %v315
    %vm317 = vweird.f32 %v311
    %vm318 = vweird.f32 %v312
    %vm319 = vmor %vm317, %vm318
    %v320 = vsel %vm319, %v312, %v316
    %v321 = vand.u32 2147483647, %v311
    %vm322 = vcmp.eq.f32.partialorder %v321, 8.507059e+37
    %v323 = vand.u32 %v311, 2147483648
    %v324 = vor.u32 1.1754944e-38, %v323
    %v325 = vsel %vm322, %v324, %v320
    %v326 = vmul.f32 1.0, %v325
    %v328 = vperm.slane %v276, 0
    %329 = vrot.lane.b32.xlu0 %v328, 64
    %v330 = vpop.permute.xlu0 %329
    %v332 = vadd.f32 %v304, %v330
    %334 = vrot.lane.b32.xlu0 %v332, 64
    %v335 = vpop.permute.xlu0 %334
    %v337 = vmul.f32 %v326, %v335
    %339 = vrot.lane.b32.xlu0 %v337, 64
    %v340 = vpop.permute.xlu0 %339
    %v342 = vadd.f32 %v277, %v340
    %v343 = vtanh.pop %v342
    %v344 = vsub.f32 0.0, %v343
    %346 = vrot.lane.b32.xlu0 %v344, 96
    %v347 = vpop.permute.xlu0 %346
    %v349 = vmul.f32 %v326, %v347
    %351 = vrot.lane.b32.xlu0 %v349, 32
    %v352 = vpop.permute.xlu0 %351
    %v354 = vadd.f32 %v343, %v352
    %356 = vrot.lane.b32.xlu0 %v354, 64
    %v357 = vpop.permute.xlu0 %356
    %359 = vst.msk [vmem:[#allocation3] sm:$0xff] %vm290, %v357
    %s360 = scalar_lea.vmem [#allocation2], 8
    %v361 = vld [vmem:[%s360] sm:$0xff]
    %v362 = vpack.c.bf16 %v354, %v354
    %364 = vrot.lane.b32.xlu0 %v362, 64
    %v365 = vpop.permute.xlu0 %364
    %v367 = vsel %vm290, %v365, 0
    %369 = vmatpush.bf16.msra.mxu0 0
    %370 = vmatpush.bf16.msra.mxu0 0
    %371 = vmatpush.bf16.msra.mxu0 0
    %372 = vmatpush.bf16.msra.mxu0 0
    %373 = vmatpush.bf16.msra.mxu0 0
    %374 = vmatpush.bf16.msra.mxu0 0
    %375 = vmatpush.bf16.msra.mxu0 %v287
    %376 = vmatpush.bf16.msra.mxu0 %v286
    %377 = vmatmul.bf16.gmra.mxu0 %v367
    %v378 = vpop.f32.mrf.mxu0
    %v379 = vadd.f32 0.0, %v378
    %v380 = vpop.f32.mrf.mxu0
    %381 = vdwg.mxu0
    %v382 = vadd.f32 %v361, %v379
    %v383 = vxor.u32 %v382, 2147483648
    %v384 = vmul.f32 %v383, 1.442695
    %v385 = vpow.pop %v384
    %v386 = vadd.f32 %v385, 1.0
    %v387 = vrcp.pop %v386
    %v388 = vmul.f32 %v386, %v387
    %v389 = vsub.f32 1.0, %v388
    %v390 = vmul.f32 %v387, %v389
    %v391 = vadd.f32 %v387, %v390
    %vm392 = vweird.f32 %v386
    %vm393 = vweird.f32 %v387
    %vm394 = vmor %vm392, %vm393
    %v395 = vsel %vm394, %v387, %v391
    %v396 = vand.u32 2147483647, %v386
    %vm397 = vcmp.eq.f32.partialorder %v396, 8.507059e+37
    %v398 = vand.u32 %v386, 2147483648
    %v399 = vor.u32 1.1754944e-38, %v398
    %v400 = vsel %vm397, %v399, %v395
    %v401 = vmul.f32 1.0, %v400
    %v402 = vadd.f32 %v379, %v330
    %404 = vrot.lane.b32.xlu0 %v402, 64
    %v405 = vpop.permute.xlu0 %404
    %v407 = vmul.f32 %v401, %v405
    %409 = vrot.lane.b32.xlu0 %v407, 64
    %v410 = vpop.permute.xlu0 %409
    %v412 = vadd.f32 %v361, %v410
    %v413 = vtanh.pop %v412
    %v414 = vsub.f32 %v354, %v413
    %416 = vrot.lane.b32.xlu0 %v414, 96
    %v417 = vpop.permute.xlu0 %416
    %v419 = vmul.f32 %v401, %v417
    %421 = vrot.lane.b32.xlu0 %v419, 32
    %v422 = vpop.permute.xlu0 %421
    %v424 = vadd.f32 %v413, %v422
    %426 = vrot.lane.b32.xlu0 %v424, 64
    %v427 = vpop.permute.xlu0 %426
    %s429 = scalar_lea.vmem [#allocation3], 8
    %430 = vst.msk [vmem:[%s429] sm:$0xff] %vm290, %v427
    %s431 = scalar_lea.vmem [#allocation2], 16
    %v432 = vld [vmem:[%s431] sm:$0xff]
    %v433 = vpack.c.bf16 %v424, %v424
    %435 = vrot.lane.b32.xlu0 %v433, 64
    %v436 = vpop.permute.xlu0 %435
    %v438 = vsel %vm290, %v436, 0
    %440 = vmatpush.bf16.msra.mxu0 0
    %441 = vmatpush.bf16.msra.mxu0 0
    %442 = vmatpush.bf16.msra.mxu0 0
    %443 = vmatpush.bf16.msra.mxu0 0
    %444 = vmatpush.bf16.msra.mxu0 0
    %445 = vmatpush.bf16.msra.mxu0 0
    %446 = vmatpush.bf16.msra.mxu0 %v287
    %447 = vmatpush.bf16.msra.mxu0 %v286
    %448 = vmatmul.bf16.gmra.mxu0 %v438
    %v449 = vpop.f32.mrf.mxu0
    %v450 = vadd.f32 0.0, %v449
    %v451 = vpop.f32.mrf.mxu0
    %452 = vdwg.mxu0
    %v453 = vadd.f32 %v432, %v450
    %v454 = vxor.u32 %v453, 2147483648
    %v455 = vmul.f32 %v454, 1.442695
    %v456 = vpow.pop %v455
    %v457 = vadd.f32 %v456, 1.0
    %v458 = vrcp.pop %v457
    %v459 = vmul.f32 %v457, %v458
    %v460 = vsub.f32 1.0, %v459
    %v461 = vmul.f32 %v458, %v460
    %v462 = vadd.f32 %v458, %v461
    %vm463 = vweird.f32 %v457
    %vm464 = vweird.f32 %v458
    %vm465 = vmor %vm463, %vm464
    %v466 = vsel %vm465, %v458, %v462
    %v467 = vand.u32 2147483647, %v457
    %vm468 = vcmp.eq.f32.partialorder %v467, 8.507059e+37
    %v469 = vand.u32 %v457, 2147483648
    %v470 = vor.u32 1.1754944e-38, %v469
    %v471 = vsel %vm468, %v470, %v466
    %v472 = vmul.f32 1.0, %v471
    %v473 = vadd.f32 %v450, %v330
    %475 = vrot.lane.b32.xlu0 %v473, 64
    %v476 = vpop.permute.xlu0 %475
    %v478 = vmul.f32 %v472, %v476
    %480 = vrot.lane.b32.xlu0 %v478, 64
    %v481 = vpop.permute.xlu0 %480
    %v483 = vadd.f32 %v432, %v481
    %v484 = vtanh.pop %v483
    %v485 = vsub.f32 %v424, %v484
    %487 = vrot.lane.b32.xlu0 %v485, 96
    %v488 = vpop.permute.xlu0 %487
    %v490 = vmul.f32 %v472, %v488
    %492 = vrot.lane.b32.xlu0 %v490, 32
    %v493 = vpop.permute.xlu0 %492
    %v495 = vadd.f32 %v484, %v493
    %497 = vrot.lane.b32.xlu0 %v495, 64
    %v498 = vpop.permute.xlu0 %497
    %s500 = scalar_lea.vmem [#allocation3], 16
    %501 = vst.msk [vmem:[%s500] sm:$0xff] %vm290, %v498
    %s502 = scalar_lea.vmem [#allocation2], 24
    %v503 = vld [vmem:[%s502] sm:$0xff]
    %v504 = vpack.c.bf16 %v495, %v495
    %506 = vrot.lane.b32.xlu0 %v504, 64
    %v507 = vpop.permute.xlu0 %506
    %v509 = vsel %vm290, %v507, 0
    %511 = vmatpush.bf16.msra.mxu0 0
    %512 = vmatpush.bf16.msra.mxu0 0
    %513 = vmatpush.bf16.msra.mxu0 0
    %514 = vmatpush.bf16.msra.mxu0 0
    %515 = vmatpush.bf16.msra.mxu0 0
    %516 = vmatpush.bf16.msra.mxu0 0
    %517 = vmatpush.bf16.msra.mxu0 %v287
    %518 = vmatpush.bf16.msra.mxu0 %v286
    %519 = vmatmul.bf16.gmra.mxu0 %v509
    %v520 = vpop.f32.mrf.mxu0
    %v521 = vadd.f32 0.0, %v520
    %v522 = vpop.f32.mrf.mxu0
    %523 = vdwg.mxu0
    %v524 = vadd.f32 %v503, %v521
    %v525 = vxor.u32 %v524, 2147483648
    %v526 = vmul.f32 %v525, 1.442695
    %v527 = vpow.pop %v526
    %v528 = vadd.f32 %v527, 1.0
    %v529 = vrcp.pop %v528
    %v530 = vmul.f32 %v528, %v529
    %v531 = vsub.f32 1.0, %v530
    %v532 = vmul.f32 %v529, %v531
    %v533 = vadd.f32 %v529, %v532
    %vm534 = vweird.f32 %v528
    %vm535 = vweird.f32 %v529
    %vm536 = vmor %vm534, %vm535
    %v537 = vsel %vm536, %v529, %v533
    %v538 = vand.u32 2147483647, %v528
    %vm539 = vcmp.eq.f32.partialorder %v538, 8.507059e+37
    %v540 = vand.u32 %v528, 2147483648
    %v541 = vor.u32 1.1754944e-38, %v540
    %v542 = vsel %vm539, %v541, %v537
    %v543 = vmul.f32 1.0, %v542
    %v544 = vadd.f32 %v521, %v330
    %546 = vrot.lane.b32.xlu0 %v544, 64
    %v547 = vpop.permute.xlu0 %546
    %v549 = vmul.f32 %v543, %v547
    %551 = vrot.lane.b32.xlu0 %v549, 64
    %v552 = vpop.permute.xlu0 %551
    %v554 = vadd.f32 %v503, %v552
    %v555 = vtanh.pop %v554
    %v556 = vsub.f32 %v495, %v555
    %558 = vrot.lane.b32.xlu0 %v556, 96
    %v559 = vpop.permute.xlu0 %558
    %v561 = vmul.f32 %v543, %v559
    %563 = vrot.lane.b32.xlu0 %v561, 32
    %v564 = vpop.permute.xlu0 %563
    %v566 = vadd.f32 %v555, %v564
    %568 = vrot.lane.b32.xlu0 %v566, 64
    %v569 = vpop.permute.xlu0 %568
    %s571 = scalar_lea.vmem [#allocation3], 24
    %572 = vst.msk [vmem:[%s571] sm:$0xff] %vm290, %v569
    %s573 = scalar_lea.vmem [#allocation2], 32
    %v574 = vld [vmem:[%s573] sm:$0xff]
    %v575 = vpack.c.bf16 %v566, %v566
    %577 = vrot.lane.b32.xlu0 %v575, 64
    %v578 = vpop.permute.xlu0 %577
    %v580 = vsel %vm290, %v578, 0
    %582 = vmatpush.bf16.msra.mxu0 0
    %583 = vmatpush.bf16.msra.mxu0 0
    %584 = vmatpush.bf16.msra.mxu0 0
    %585 = vmatpush.bf16.msra.mxu0 0
    %586 = vmatpush.bf16.msra.mxu0 0
    %587 = vmatpush.bf16.msra.mxu0 0
    %588 = vmatpush.bf16.msra.mxu0 %v287
    %589 = vmatpush.bf16.msra.mxu0 %v286
    %590 = vmatmul.bf16.gmra.mxu0 %v580
    %v591 = vpop.f32.mrf.mxu0
    %v592 = vadd.f32 0.0, %v591
    %v593 = vpop.f32.mrf.mxu0
    %594 = vdwg.mxu0
    %v595 = vadd.f32 %v574, %v592
    %v596 = vxor.u32 %v595, 2147483648
    %v597 = vmul.f32 %v596, 1.442695
    %v598 = vpow.pop %v597
    %v599 = vadd.f32 %v598, 1.0
    %v600 = vrcp.pop %v599
    %v601 = vmul.f32 %v599, %v600
    %v602 = vsub.f32 1.0, %v601
    %v603 = vmul.f32 %v600, %v602
    %v604 = vadd.f32 %v600, %v603
    %vm605 = vweird.f32 %v599
    %vm606 = vweird.f32 %v600
    %vm607 = vmor %vm605, %vm606
    %v608 = vsel %vm607, %v600, %v604
    %v609 = vand.u32 2147483647, %v599
    %vm610 = vcmp.eq.f32.partialorder %v609, 8.507059e+37
    %v611 = vand.u32 %v599, 2147483648
    %v612 = vor.u32 1.1754944e-38, %v611
    %v613 = vsel %vm610, %v612, %v608
    %v614 = vmul.f32 1.0, %v613
    %v615 = vadd.f32 %v592, %v330
    %617 = vrot.lane.b32.xlu0 %v615, 64
    %v618 = vpop.permute.xlu0 %617
    %v620 = vmul.f32 %v614, %v618
    %622 = vrot.lane.b32.xlu0 %v620, 64
    %v623 = vpop.permute.xlu0 %622
    %v625 = vadd.f32 %v574, %v623
    %v626 = vtanh.pop %v625
    %v627 = vsub.f32 %v566, %v626
    %629 = vrot.lane.b32.xlu0 %v627, 96
    %v630 = vpop.permute.xlu0 %629
    %v632 = vmul.f32 %v614, %v630
    %634 = vrot.lane.b32.xlu0 %v632, 32
    %v635 = vpop.permute.xlu0 %634
    %v637 = vadd.f32 %v626, %v635
    %639 = vrot.lane.b32.xlu0 %v637, 64
    %v640 = vpop.permute.xlu0 %639
    %s642 = scalar_lea.vmem [#allocation3], 32
    %643 = vst.msk [vmem:[%s642] sm:$0xff] %vm290, %v640
    %s644 = scalar_lea.vmem [#allocation2], 40
    %v645 = vld [vmem:[%s644] sm:$0xff]
    %v646 = vpack.c.bf16 %v637, %v637
    %648 = vrot.lane.b32.xlu0 %v646, 64
    %v649 = vpop.permute.xlu0 %648
    %v651 = vsel %vm290, %v649, 0
    %653 = vmatpush.bf16.msra.mxu0 0
    %654 = vmatpush.bf16.msra.mxu0 0
    %655 = vmatpush.bf16.msra.mxu0 0
    %656 = vmatpush.bf16.msra.mxu0 0
    %657 = vmatpush.bf16.msra.mxu0 0
    %658 = vmatpush.bf16.msra.mxu0 0
    %659 = vmatpush.bf16.msra.mxu0 %v287
    %660 = vmatpush.bf16.msra.mxu0 %v286
    %661 = vmatmul.bf16.gmra.mxu0 %v651
    %v662 = vpop.f32.mrf.mxu0
    %v663 = vadd.f32 0.0, %v662
    %v664 = vpop.f32.mrf.mxu0
    %665 = vdwg.mxu0
    %v666 = vadd.f32 %v645, %v663
    %v667 = vxor.u32 %v666, 2147483648
    %v668 = vmul.f32 %v667, 1.442695
    %v669 = vpow.pop %v668
    %v670 = vadd.f32 %v669, 1.0
    %v671 = vrcp.pop %v670
    %v672 = vmul.f32 %v670, %v671
    %v673 = vsub.f32 1.0, %v672
    %v674 = vmul.f32 %v671, %v673
    %v675 = vadd.f32 %v671, %v674
    %vm676 = vweird.f32 %v670
    %vm677 = vweird.f32 %v671
    %vm678 = vmor %vm676, %vm677
    %v679 = vsel %vm678, %v671, %v675
    %v680 = vand.u32 2147483647, %v670
    %vm681 = vcmp.eq.f32.partialorder %v680, 8.507059e+37
    %v682 = vand.u32 %v670, 2147483648
    %v683 = vor.u32 1.1754944e-38, %v682
    %v684 = vsel %vm681, %v683, %v679
    %v685 = vmul.f32 1.0, %v684
    %v686 = vadd.f32 %v663, %v330
    %688 = vrot.lane.b32.xlu0 %v686, 64
    %v689 = vpop.permute.xlu0 %688
    %v691 = vmul.f32 %v685, %v689
    %693 = vrot.lane.b32.xlu0 %v691, 64
    %v694 = vpop.permute.xlu0 %693
    %v696 = vadd.f32 %v645, %v694
    %v697 = vtanh.pop %v696
    %v698 = vsub.f32 %v637, %v697
    %700 = vrot.lane.b32.xlu0 %v698, 96
    %v701 = vpop.permute.xlu0 %700
    %v703 = vmul.f32 %v685, %v701
    %705 = vrot.lane.b32.xlu0 %v703, 32
    %v706 = vpop.permute.xlu0 %705
    %v708 = vadd.f32 %v697, %v706
    %710 = vrot.lane.b32.xlu0 %v708, 64
    %v711 = vpop.permute.xlu0 %710
    %s713 = scalar_lea.vmem [#allocation3], 40
    %714 = vst.msk [vmem:[%s713] sm:$0xff] %vm290, %v711
    %s715 = scalar_lea.vmem [#allocation2], 48
    %v716 = vld [vmem:[%s715] sm:$0xff]
    %v717 = vpack.c.bf16 %v708, %v708
    %719 = vrot.lane.b32.xlu0 %v717, 64
    %v720 = vpop.permute.xlu0 %719
    %v722 = vsel %vm290, %v720, 0
    %724 = vmatpush.bf16.msra.mxu0 0
    %725 = vmatpush.bf16.msra.mxu0 0
    %726 = vmatpush.bf16.msra.mxu0 0
    %727 = vmatpush.bf16.msra.mxu0 0
    %728 = vmatpush.bf16.msra.mxu0 0
    %729 = vmatpush.bf16.msra.mxu0 0
    %730 = vmatpush.bf16.msra.mxu0 %v287
    %731 = vmatpush.bf16.msra.mxu0 %v286
    %732 = vmatmul.bf16.gmra.mxu0 %v722
    %v733 = vpop.f32.mrf.mxu0
    %v734 = vadd.f32 0.0, %v733
    %v735 = vpop.f32.mrf.mxu0
    %736 = vdwg.mxu0
    %v737 = vadd.f32 %v716, %v734
    %v738 = vxor.u32 %v737, 2147483648
    %v739 = vmul.f32 %v738, 1.442695
    %v740 = vpow.pop %v739
    %v741 = vadd.f32 %v740, 1.0
    %v742 = vrcp.pop %v741
    %v743 = vmul.f32 %v741, %v742
    %v744 = vsub.f32 1.0, %v743
    %v745 = vmul.f32 %v742, %v744
    %v746 = vadd.f32 %v742, %v745
    %vm747 = vweird.f32 %v741
    %vm748 = vweird.f32 %v742
    %vm749 = vmor %vm747, %vm748
    %v750 = vsel %vm749, %v742, %v746
    %v751 = vand.u32 2147483647, %v741
    %vm752 = vcmp.eq.f32.partialorder %v751, 8.507059e+37
    %v753 = vand.u32 %v741, 2147483648
    %v754 = vor.u32 1.1754944e-38, %v753
    %v755 = vsel %vm752, %v754, %v750
    %v756 = vmul.f32 1.0, %v755
    %v757 = vadd.f32 %v734, %v330
    %759 = vrot.lane.b32.xlu0 %v757, 64
    %v760 = vpop.permute.xlu0 %759
    %v762 = vmul.f32 %v756, %v760
    %764 = vrot.lane.b32.xlu0 %v762, 64
    %v765 = vpop.permute.xlu0 %764
    %v767 = vadd.f32 %v716, %v765
    %v768 = vtanh.pop %v767
    %v769 = vsub.f32 %v708, %v768
    %771 = vrot.lane.b32.xlu0 %v769, 96
    %v772 = vpop.permute.xlu0 %771
    %v774 = vmul.f32 %v756, %v772
    %776 = vrot.lane.b32.xlu0 %v774, 32
    %v777 = vpop.permute.xlu0 %776
    %v779 = vadd.f32 %v768, %v777
    %781 = vrot.lane.b32.xlu0 %v779, 64
    %v782 = vpop.permute.xlu0 %781
    %s784 = scalar_lea.vmem [#allocation3], 48
    %785 = vst.msk [vmem:[%s784] sm:$0xff] %vm290, %v782
    %s786 = scalar_lea.vmem [#allocation2], 56
    %v787 = vld [vmem:[%s786] sm:$0xff]
    %v788 = vpack.c.bf16 %v779, %v779
    %790 = vrot.lane.b32.xlu0 %v788, 64
    %v791 = vpop.permute.xlu0 %790
    %v793 = vsel %vm290, %v791, 0
    %795 = vmatpush.bf16.msra.mxu0 0
    %796 = vmatpush.bf16.msra.mxu0 0
    %797 = vmatpush.bf16.msra.mxu0 0
    %798 = vmatpush.bf16.msra.mxu0 0
    %799 = vmatpush.bf16.msra.mxu0 0
    %800 = vmatpush.bf16.msra.mxu0 0
    %801 = vmatpush.bf16.msra.mxu0 %v287
    %802 = vmatpush.bf16.msra.mxu0 %v286
    %803 = vmatmul.bf16.gmra.mxu0 %v793
    %v804 = vpop.f32.mrf.mxu0
    %v805 = vadd.f32 0.0, %v804
    %v806 = vpop.f32.mrf.mxu0
    %807 = vdwg.mxu0
    %v808 = vadd.f32 %v787, %v805
    %v809 = vxor.u32 %v808, 2147483648
    %v810 = vmul.f32 %v809, 1.442695
    %v811 = vpow.pop %v810
    %v812 = vadd.f32 %v811, 1.0
    %v813 = vrcp.pop %v812
    %v814 = vmul.f32 %v812, %v813
    %v815 = vsub.f32 1.0, %v814
    %v816 = vmul.f32 %v813, %v815
    %v817 = vadd.f32 %v813, %v816
    %vm818 = vweird.f32 %v812
    %vm819 = vweird.f32 %v813
    %vm820 = vmor %vm818, %vm819
    %v821 = vsel %vm820, %v813, %v817
    %v822 = vand.u32 2147483647, %v812
    %vm823 = vcmp.eq.f32.partialorder %v822, 8.507059e+37
    %v824 = vand.u32 %v812, 2147483648
    %v825 = vor.u32 1.1754944e-38, %v824
    %v826 = vsel %vm823, %v825, %v821
    %v827 = vmul.f32 1.0, %v826
    %v828 = vadd.f32 %v805, %v330
    %830 = vrot.lane.b32.xlu0 %v828, 64
    %v831 = vpop.permute.xlu0 %830
    %v833 = vmul.f32 %v827, %v831
    %835 = vrot.lane.b32.xlu0 %v833, 64
    %v836 = vpop.permute.xlu0 %835
    %v838 = vadd.f32 %v787, %v836
    %v839 = vtanh.pop %v838
    %v840 = vsub.f32 %v779, %v839
    %842 = vrot.lane.b32.xlu0 %v840, 96
    %v843 = vpop.permute.xlu0 %842
    %v845 = vmul.f32 %v827, %v843
    %847 = vrot.lane.b32.xlu0 %v845, 32
    %v848 = vpop.permute.xlu0 %847
    %v850 = vadd.f32 %v839, %v848
    %852 = vrot.lane.b32.xlu0 %v850, 64
    %v853 = vpop.permute.xlu0 %852
    %s855 = scalar_lea.vmem [#allocation3], 56
    %856 = vst.msk [vmem:[%s855] sm:$0xff] %vm290, %v853
    %v857 = vld [vmem:[%s7] sm:$0x1]
    %v858 = vld [vmem:[#allocation10] sm:$0xff]
    %v859 = vld [vmem:[#allocation10 + $0x8] sm:$0xff]
    %v860 = vld [vmem:[#allocation10 + $0x10] sm:$0xff]
    %v861 = vld [vmem:[#allocation10 + $0x18] sm:$0xff]
    %v862 = vld [vmem:[#allocation3] sm:$0xff]
    %v863 = vld [vmem:[#allocation3 + $0x8] sm:$0xff]
    %v864 = vld [vmem:[#allocation3 + $0x10] sm:$0xff]
    %v865 = vld [vmem:[#allocation3 + $0x18] sm:$0xff]
    %v866 = vld [vmem:[#allocation3 + $0x20] sm:$0xff]
    %v867 = vld [vmem:[#allocation3 + $0x28] sm:$0xff]
    %v868 = vld [vmem:[#allocation3 + $0x30] sm:$0xff]
    %v869 = vld [vmem:[#allocation3 + $0x38] sm:$0xff]
    %v871 = vperm.slane %v857, 0
    %v874 = vsel %vm290, %v862, 0
    %v877 = vsel %vm290, %v863, 0
    %v880 = vsel %vm290, %v864, 0
    %v883 = vsel %vm290, %v865, 0
    %v886 = vsel %vm290, %v866, 0
    %v889 = vsel %vm290, %v867, 0
    %v892 = vsel %vm290, %v868, 0
    %v895 = vsel %vm290, %v869, 0
    %897 = vmatpush.msra.mxu0 0.0
    %898 = vmatpush.msra.mxu0 0.0
    %899 = vmatpush.msra.mxu0 0.0
    %900 = vmatpush.msra.mxu0 0.0
    %901 = vmatpush.msra.mxu0 0.0
    %902 = vmatpush.msra.mxu0 0.0
    %903 = vmatpush.msra.mxu0 0.0
    %904 = vmatpush.msra.mxu0 0.0
    %905 = vmatpush.msra.mxu0 0.0
    %906 = vmatpush.msra.mxu0 0.0
    %907 = vmatpush.msra.mxu0 0.0
    %908 = vmatpush.msra.mxu0 0.0
    %909 = vmatpush.msra.mxu0 %v861
    %910 = vmatpush.msra.mxu0 %v860
    %911 = vmatpush.msra.mxu0 %v859
    %912 = vmatpush.msra.mxu0 %v858
    %913 = vmatmul.f32.gmra.mxu0 %v874
    %v914 = vpop.f32.mrf.mxu0
    %v915 = vadd.f32 %v871, %v914
    %916 = vmatmul.f32.gmra.mxu0 %v877
    %v917 = vpop.f32.mrf.mxu0
    %v918 = vadd.f32 %v871, %v917
    %919 = vmatmul.f32.gmra.mxu0 %v880
    %v920 = vpop.f32.mrf.mxu0
    %v921 = vadd.f32 %v871, %v920
    %922 = vmatmul.f32.gmra.mxu0 %v883
    %v923 = vpop.f32.mrf.mxu0
    %v924 = vadd.f32 %v871, %v923
    %925 = vmatmul.f32.gmra.mxu0 %v886
    %v926 = vpop.f32.mrf.mxu0
    %v927 = vadd.f32 %v871, %v926
    %928 = vmatmul.f32.gmra.mxu0 %v889
    %v929 = vpop.f32.mrf.mxu0
    %v930 = vadd.f32 %v871, %v929
    %931 = vmatmul.f32.gmra.mxu0 %v892
    %v932 = vpop.f32.mrf.mxu0
    %v933 = vadd.f32 %v871, %v932
    %934 = vmatmul.f32.gmra.mxu0 %v895
    %v935 = vpop.f32.mrf.mxu0
    %v936 = vadd.f32 %v871, %v935
    %937 = vdwg.mxu0
    %938 = vst.msk [vmem:[#allocation2] sm:$0xff] %vm263, %v915
    %939 = vst.msk [vmem:[#allocation2 + $0x8] sm:$0xff] %vm263, %v918
    %940 = vst.msk [vmem:[#allocation2 + $0x10] sm:$0xff] %vm263, %v921
    %941 = vst.msk [vmem:[#allocation2 + $0x18] sm:$0xff] %vm263, %v924
    %942 = vst.msk [vmem:[#allocation2 + $0x20] sm:$0xff] %vm263, %v927
    %943 = vst.msk [vmem:[#allocation2 + $0x28] sm:$0xff] %vm263, %v930
    %944 = vst.msk [vmem:[#allocation2 + $0x30] sm:$0xff] %vm263, %v933
    %945 = vst.msk [vmem:[#allocation2 + $0x38] sm:$0xff] %vm263, %v936
    %v946 = vld [vmem:[#allocation12] sm:$0xf]
    %v947 = vld [vmem:[#allocation12 + $0x4] sm:$0xf]
    %v948 = vld [vmem:[#allocation12 + $0x8] sm:$0xf]
    %v949 = vld [vmem:[#allocation12 + $0xc] sm:$0xf]
    %v950 = vld [vmem:[%s8] sm:$0x1]
    %v951 = vld [vmem:[#allocation2] sm:$0xff]
    %v956 = vunpack.c.l.b16 %v946
    %v957 = vunpack.c.l.b16 %v947
    %v958 = vunpack.c.l.b16 %v948
    %v959 = vunpack.c.l.b16 %v949
    %v960 = vpack.c.b16 %v957, %v956
    %v961 = vpack.c.b16 %v959, %v958
    %964 = vmatpush.bf16.msra.mxu0 0
    %965 = vmatpush.bf16.msra.mxu0 0
    %966 = vmatpush.bf16.msra.mxu0 0
    %967 = vmatpush.bf16.msra.mxu0 0
    %968 = vmatpush.bf16.msra.mxu0 0
    %969 = vmatpush.bf16.msra.mxu0 0
    %970 = vmatpush.bf16.msra.mxu0 %v961
    %971 = vmatpush.bf16.msra.mxu0 %v960
    %972 = vmatmul.bf16.gmra.mxu0 %v292
    %v973 = vpop.f32.mrf.mxu0
    %v974 = vadd.f32 0.0, %v973
    %v975 = vpop.f32.mrf.mxu0
    %976 = vdwg.mxu0
    %v977 = vadd.f32 %v951, %v974
    %v978 = vxor.u32 %v977, 2147483648
    %v979 = vmul.f32 %v978, 1.442695
    %v980 = vpow.pop %v979
    %v981 = vadd.f32 %v980, 1.0
    %v982 = vrcp.pop %v981
    %v983 = vmul.f32 %v981, %v982
    %v984 = vsub.f32 1.0, %v983
    %v985 = vmul.f32 %v982, %v984
    %v986 = vadd.f32 %v982, %v985
    %vm987 = vweird.f32 %v981
    %vm988 = vweird.f32 %v982
    %vm989 = vmor %vm987, %vm988
    %v990 = vsel %vm989, %v982, %v986
    %v991 = vand.u32 2147483647, %v981
    %vm992 = vcmp.eq.f32.partialorder %v991, 8.507059e+37
    %v993 = vand.u32 %v981, 2147483648
    %v994 = vor.u32 1.1754944e-38, %v993
    %v995 = vsel %vm992, %v994, %v990
    %v996 = vmul.f32 1.0, %v995
    %v998 = vperm.slane %v950, 0
    %999 = vrot.lane.b32.xlu0 %v998, 64
    %v1000 = vpop.permute.xlu0 %999
    %v1002 = vadd.f32 %v974, %v1000
    %1004 = vrot.lane.b32.xlu0 %v1002, 64
    %v1005 = vpop.permute.xlu0 %1004
    %v1007 = vmul.f32 %v996, %v1005
    %1009 = vrot.lane.b32.xlu0 %v1007, 64
    %v1010 = vpop.permute.xlu0 %1009
    %v1012 = vadd.f32 %v951, %v1010
    %v1013 = vtanh.pop %v1012
    %v1014 = vsub.f32 0.0, %v1013
    %1016 = vrot.lane.b32.xlu0 %v1014, 96
    %v1017 = vpop.permute.xlu0 %1016
    %v1019 = vmul.f32 %v996, %v1017
    %1021 = vrot.lane.b32.xlu0 %v1019, 32
    %v1022 = vpop.permute.xlu0 %1021
    %v1024 = vadd.f32 %v1013, %v1022
    %1026 = vrot.lane.b32.xlu0 %v1024, 64
    %v1027 = vpop.permute.xlu0 %1026
    %1029 = vst.msk [vmem:[#allocation3] sm:$0xff] %vm290, %v1027
    %v1030 = vld [vmem:[%s360] sm:$0xff]
    %v1031 = vpack.c.bf16 %v1024, %v1024
    %1033 = vrot.lane.b32.xlu0 %v1031, 64
    %v1034 = vpop.permute.xlu0 %1033
    %v1036 = vsel %vm290, %v1034, 0
    %1038 = vmatpush.bf16.msra.mxu0 0
    %1039 = vmatpush.bf16.msra.mxu0 0
    %1040 = vmatpush.bf16.msra.mxu0 0
    %1041 = vmatpush.bf16.msra.mxu0 0
    %1042 = vmatpush.bf16.msra.mxu0 0
    %1043 = vmatpush.bf16.msra.mxu0 0
    %1044 = vmatpush.bf16.msra.mxu0 %v961
    %1045 = vmatpush.bf16.msra.mxu0 %v960
    %1046 = vmatmul.bf16.gmra.mxu0 %v1036
    %v1047 = vpop.f32.mrf.mxu0
    %v1048 = vadd.f32 0.0, %v1047
    %v1049 = vpop.f32.mrf.mxu0
    %1050 = vdwg.mxu0
    %v1051 = vadd.f32 %v1030, %v1048
    %v1052 = vxor.u32 %v1051, 2147483648
    %v1053 = vmul.f32 %v1052, 1.442695
    %v1054 = vpow.pop %v1053
    %v1055 = vadd.f32 %v1054, 1.0
    %v1056 = vrcp.pop %v1055
    %v1057 = vmul.f32 %v1055, %v1056
    %v1058 = vsub.f32 1.0, %v1057
    %v1059 = vmul.f32 %v1056, %v1058
    %v1060 = vadd.f32 %v1056, %v1059
    %vm1061 = vweird.f32 %v1055
    %vm1062 = vweird.f32 %v1056
    %vm1063 = vmor %vm1061, %vm1062
    %v1064 = vsel %vm1063, %v1056, %v1060
    %v1065 = vand.u32 2147483647, %v1055
    %vm1066 = vcmp.eq.f32.partialorder %v1065, 8.507059e+37
    %v1067 = vand.u32 %v1055, 2147483648
    %v1068 = vor.u32 1.1754944e-38, %v1067
    %v1069 = vsel %vm1066, %v1068, %v1064
    %v1070 = vmul.f32 1.0, %v1069
    %v1071 = vadd.f32 %v1048, %v1000
    %1073 = vrot.lane.b32.xlu0 %v1071, 64
    %v1074 = vpop.permute.xlu0 %1073
    %v1076 = vmul.f32 %v1070, %v1074
    %1078 = vrot.lane.b32.xlu0 %v1076, 64
    %v1079 = vpop.permute.xlu0 %1078
    %v1081 = vadd.f32 %v1030, %v1079
    %v1082 = vtanh.pop %v1081
    %v1083 = vsub.f32 %v1024, %v1082
    %1085 = vrot.lane.b32.xlu0 %v1083, 96
    %v1086 = vpop.permute.xlu0 %1085
    %v1088 = vmul.f32 %v1070, %v1086
    %1090 = vrot.lane.b32.xlu0 %v1088, 32
    %v1091 = vpop.permute.xlu0 %1090
    %v1093 = vadd.f32 %v1082, %v1091
    %1095 = vrot.lane.b32.xlu0 %v1093, 64
    %v1096 = vpop.permute.xlu0 %1095
    %1098 = vst.msk [vmem:[%s429] sm:$0xff] %vm290, %v1096
    %v1099 = vld [vmem:[%s431] sm:$0xff]
    %v1100 = vpack.c.bf16 %v1093, %v1093
    %1102 = vrot.lane.b32.xlu0 %v1100, 64
    %v1103 = vpop.permute.xlu0 %1102
    %v1105 = vsel %vm290, %v1103, 0
    %1107 = vmatpush.bf16.msra.mxu0 0
    %1108 = vmatpush.bf16.msra.mxu0 0
    %1109 = vmatpush.bf16.msra.mxu0 0
    %1110 = vmatpush.bf16.msra.mxu0 0
    %1111 = vmatpush.bf16.msra.mxu0 0
    %1112 = vmatpush.bf16.msra.mxu0 0
    %1113 = vmatpush.bf16.msra.mxu0 %v961
    %1114 = vmatpush.bf16.msra.mxu0 %v960
    %1115 = vmatmul.bf16.gmra.mxu0 %v1105
    %v1116 = vpop.f32.mrf.mxu0
    %v1117 = vadd.f32 0.0, %v1116
    %v1118 = vpop.f32.mrf.mxu0
    %1119 = vdwg.mxu0
    %v1120 = vadd.f32 %v1099, %v1117
    %v1121 = vxor.u32 %v1120, 2147483648
    %v1122 = vmul.f32 %v1121, 1.442695
    %v1123 = vpow.pop %v1122
    %v1124 = vadd.f32 %v1123, 1.0
    %v1125 = vrcp.pop %v1124
    %v1126 = vmul.f32 %v1124, %v1125
    %v1127 = vsub.f32 1.0, %v1126
    %v1128 = vmul.f32 %v1125, %v1127
    %v1129 = vadd.f32 %v1125, %v1128
    %vm1130 = vweird.f32 %v1124
    %vm1131 = vweird.f32 %v1125
    %vm1132 = vmor %vm1130, %vm1131
    %v1133 = vsel %vm1132, %v1125, %v1129
    %v1134 = vand.u32 2147483647, %v1124
    %vm1135 = vcmp.eq.f32.partialorder %v1134, 8.507059e+37
    %v1136 = vand.u32 %v1124, 2147483648
    %v1137 = vor.u32 1.1754944e-38, %v1136
    %v1138 = vsel %vm1135, %v1137, %v1133
    %v1139 = vmul.f32 1.0, %v1138
    %v1140 = vadd.f32 %v1117, %v1000
    %1142 = vrot.lane.b32.xlu0 %v1140, 64
    %v1143 = vpop.permute.xlu0 %1142
    %v1145 = vmul.f32 %v1139, %v1143
    %1147 = vrot.lane.b32.xlu0 %v1145, 64
    %v1148 = vpop.permute.xlu0 %1147
    %v1150 = vadd.f32 %v1099, %v1148
    %v1151 = vtanh.pop %v1150
    %v1152 = vsub.f32 %v1093, %v1151
    %1154 = vrot.lane.b32.xlu0 %v1152, 96
    %v1155 = vpop.permute.xlu0 %1154
    %v1157 = vmul.f32 %v1139, %v1155
    %1159 = vrot.lane.b32.xlu0 %v1157, 32
    %v1160 = vpop.permute.xlu0 %1159
    %v1162 = vadd.f32 %v1151, %v1160
    %1164 = vrot.lane.b32.xlu0 %v1162, 64
    %v1165 = vpop.permute.xlu0 %1164
    %1167 = vst.msk [vmem:[%s500] sm:$0xff] %vm290, %v1165
    %v1168 = vld [vmem:[%s502] sm:$0xff]
    %v1169 = vpack.c.bf16 %v1162, %v1162
    %1171 = vrot.lane.b32.xlu0 %v1169, 64
    %v1172 = vpop.permute.xlu0 %1171
    %v1174 = vsel %vm290, %v1172, 0
    %1176 = vmatpush.bf16.msra.mxu0 0
    %1177 = vmatpush.bf16.msra.mxu0 0
    %1178 = vmatpush.bf16.msra.mxu0 0
    %1179 = vmatpush.bf16.msra.mxu0 0
    %1180 = vmatpush.bf16.msra.mxu0 0
    %1181 = vmatpush.bf16.msra.mxu0 0
    %1182 = vmatpush.bf16.msra.mxu0 %v961
    %1183 = vmatpush.bf16.msra.mxu0 %v960
    %1184 = vmatmul.bf16.gmra.mxu0 %v1174
    %v1185 = vpop.f32.mrf.mxu0
    %v1186 = vadd.f32 0.0, %v1185
    %v1187 = vpop.f32.mrf.mxu0
    %1188 = vdwg.mxu0
    %v1189 = vadd.f32 %v1168, %v1186
    %v1190 = vxor.u32 %v1189, 2147483648
    %v1191 = vmul.f32 %v1190, 1.442695
    %v1192 = vpow.pop %v1191
    %v1193 = vadd.f32 %v1192, 1.0
    %v1194 = vrcp.pop %v1193
    %v1195 = vmul.f32 %v1193, %v1194
    %v1196 = vsub.f32 1.0, %v1195
    %v1197 = vmul.f32 %v1194, %v1196
    %v1198 = vadd.f32 %v1194, %v1197
    %vm1199 = vweird.f32 %v1193
    %vm1200 = vweird.f32 %v1194
    %vm1201 = vmor %vm1199, %vm1200
    %v1202 = vsel %vm1201, %v1194, %v1198
    %v1203 = vand.u32 2147483647, %v1193
    %vm1204 = vcmp.eq.f32.partialorder %v1203, 8.507059e+37
    %v1205 = vand.u32 %v1193, 2147483648
    %v1206 = vor.u32 1.1754944e-38, %v1205
    %v1207 = vsel %vm1204, %v1206, %v1202
    %v1208 = vmul.f32 1.0, %v1207
    %v1209 = vadd.f32 %v1186, %v1000
    %1211 = vrot.lane.b32.xlu0 %v1209, 64
    %v1212 = vpop.permute.xlu0 %1211
    %v1214 = vmul.f32 %v1208, %v1212
    %1216 = vrot.lane.b32.xlu0 %v1214, 64
    %v1217 = vpop.permute.xlu0 %1216
    %v1219 = vadd.f32 %v1168, %v1217
    %v1220 = vtanh.pop %v1219
    %v1221 = vsub.f32 %v1162, %v1220
    %1223 = vrot.lane.b32.xlu0 %v1221, 96
    %v1224 = vpop.permute.xlu0 %1223
    %v1226 = vmul.f32 %v1208, %v1224
    %1228 = vrot.lane.b32.xlu0 %v1226, 32
    %v1229 = vpop.permute.xlu0 %1228
    %v1231 = vadd.f32 %v1220, %v1229
    %1233 = vrot.lane.b32.xlu0 %v1231, 64
    %v1234 = vpop.permute.xlu0 %1233
    %1236 = vst.msk [vmem:[%s571] sm:$0xff] %vm290, %v1234
    %v1237 = vld [vmem:[%s573] sm:$0xff]
    %v1238 = vpack.c.bf16 %v1231, %v1231
    %1240 = vrot.lane.b32.xlu0 %v1238, 64
    %v1241 = vpop.permute.xlu0 %1240
    %v1243 = vsel %vm290, %v1241, 0
    %1245 = vmatpush.bf16.msra.mxu0 0
    %1246 = vmatpush.bf16.msra.mxu0 0
    %1247 = vmatpush.bf16.msra.mxu0 0
    %1248 = vmatpush.bf16.msra.mxu0 0
    %1249 = vmatpush.bf16.msra.mxu0 0
    %1250 = vmatpush.bf16.msra.mxu0 0
    %1251 = vmatpush.bf16.msra.mxu0 %v961
    %1252 = vmatpush.bf16.msra.mxu0 %v960
    %1253 = vmatmul.bf16.gmra.mxu0 %v1243
    %v1254 = vpop.f32.mrf.mxu0
    %v1255 = vadd.f32 0.0, %v1254
    %v1256 = vpop.f32.mrf.mxu0
    %1257 = vdwg.mxu0
    %v1258 = vadd.f32 %v1237, %v1255
    %v1259 = vxor.u32 %v1258, 2147483648
    %v1260 = vmul.f32 %v1259, 1.442695
    %v1261 = vpow.pop %v1260
    %v1262 = vadd.f32 %v1261, 1.0
    %v1263 = vrcp.pop %v1262
    %v1264 = vmul.f32 %v1262, %v1263
    %v1265 = vsub.f32 1.0, %v1264
    %v1266 = vmul.f32 %v1263, %v1265
    %v1267 = vadd.f32 %v1263, %v1266
    %vm1268 = vweird.f32 %v1262
    %vm1269 = vweird.f32 %v1263
    %vm1270 = vmor %vm1268, %vm1269
    %v1271 = vsel %vm1270, %v1263, %v1267
    %v1272 = vand.u32 2147483647, %v1262
    %vm1273 = vcmp.eq.f32.partialorder %v1272, 8.507059e+37
    %v1274 = vand.u32 %v1262, 2147483648
    %v1275 = vor.u32 1.1754944e-38, %v1274
    %v1276 = vsel %vm1273, %v1275, %v1271
    %v1277 = vmul.f32 1.0, %v1276
    %v1278 = vadd.f32 %v1255, %v1000
    %1280 = vrot.lane.b32.xlu0 %v1278, 64
    %v1281 = vpop.permute.xlu0 %1280
    %v1283 = vmul.f32 %v1277, %v1281
    %1285 = vrot.lane.b32.xlu0 %v1283, 64
    %v1286 = vpop.permute.xlu0 %1285
    %v1288 = vadd.f32 %v1237, %v1286
    %v1289 = vtanh.pop %v1288
    %v1290 = vsub.f32 %v1231, %v1289
    %1292 = vrot.lane.b32.xlu0 %v1290, 96
    %v1293 = vpop.permute.xlu0 %1292
    %v1295 = vmul.f32 %v1277, %v1293
    %1297 = vrot.lane.b32.xlu0 %v1295, 32
    %v1298 = vpop.permute.xlu0 %1297
    %v1300 = vadd.f32 %v1289, %v1298
    %1302 = vrot.lane.b32.xlu0 %v1300, 64
    %v1303 = vpop.permute.xlu0 %1302
    %1305 = vst.msk [vmem:[%s642] sm:$0xff] %vm290, %v1303
    %v1306 = vld [vmem:[%s644] sm:$0xff]
    %v1307 = vpack.c.bf16 %v1300, %v1300
    %1309 = vrot.lane.b32.xlu0 %v1307, 64
    %v1310 = vpop.permute.xlu0 %1309
    %v1312 = vsel %vm290, %v1310, 0
    %1314 = vmatpush.bf16.msra.mxu0 0
    %1315 = vmatpush.bf16.msra.mxu0 0
    %1316 = vmatpush.bf16.msra.mxu0 0
    %1317 = vmatpush.bf16.msra.mxu0 0
    %1318 = vmatpush.bf16.msra.mxu0 0
    %1319 = vmatpush.bf16.msra.mxu0 0
    %1320 = vmatpush.bf16.msra.mxu0 %v961
    %1321 = vmatpush.bf16.msra.mxu0 %v960
    %1322 = vmatmul.bf16.gmra.mxu0 %v1312
    %v1323 = vpop.f32.mrf.mxu0
    %v1324 = vadd.f32 0.0, %v1323
    %v1325 = vpop.f32.mrf.mxu0
    %1326 = vdwg.mxu0
    %v1327 = vadd.f32 %v1306, %v1324
    %v1328 = vxor.u32 %v1327, 2147483648
    %v1329 = vmul.f32 %v1328, 1.442695
    %v1330 = vpow.pop %v1329
    %v1331 = vadd.f32 %v1330, 1.0
    %v1332 = vrcp.pop %v1331
    %v1333 = vmul.f32 %v1331, %v1332
    %v1334 = vsub.f32 1.0, %v1333
    %v1335 = vmul.f32 %v1332, %v1334
    %v1336 = vadd.f32 %v1332, %v1335
    %vm1337 = vweird.f32 %v1331
    %vm1338 = vweird.f32 %v1332
    %vm1339 = vmor %vm1337, %vm1338
    %v1340 = vsel %vm1339, %v1332, %v1336
    %v1341 = vand.u32 2147483647, %v1331
    %vm1342 = vcmp.eq.f32.partialorder %v1341, 8.507059e+37
    %v1343 = vand.u32 %v1331, 2147483648
    %v1344 = vor.u32 1.1754944e-38, %v1343
    %v1345 = vsel %vm1342, %v1344, %v1340
    %v1346 = vmul.f32 1.0, %v1345
    %v1347 = vadd.f32 %v1324, %v1000
    %1349 = vrot.lane.b32.xlu0 %v1347, 64
    %v1350 = vpop.permute.xlu0 %1349
    %v1352 = vmul.f32 %v1346, %v1350
    %1354 = vrot.lane.b32.xlu0 %v1352, 64
    %v1355 = vpop.permute.xlu0 %1354
    %v1357 = vadd.f32 %v1306, %v1355
    %v1358 = vtanh.pop %v1357
    %v1359 = vsub.f32 %v1300, %v1358
    %1361 = vrot.lane.b32.xlu0 %v1359, 96
    %v1362 = vpop.permute.xlu0 %1361
    %v1364 = vmul.f32 %v1346, %v1362
    %1366 = vrot.lane.b32.xlu0 %v1364, 32
    %v1367 = vpop.permute.xlu0 %1366
    %v1369 = vadd.f32 %v1358, %v1367
    %1371 = vrot.lane.b32.xlu0 %v1369, 64
    %v1372 = vpop.permute.xlu0 %1371
    %1374 = vst.msk [vmem:[%s713] sm:$0xff] %vm290, %v1372
    %v1375 = vld [vmem:[%s715] sm:$0xff]
    %v1376 = vpack.c.bf16 %v1369, %v1369
    %1378 = vrot.lane.b32.xlu0 %v1376, 64
    %v1379 = vpop.permute.xlu0 %1378
    %v1381 = vsel %vm290, %v1379, 0
    %1383 = vmatpush.bf16.msra.mxu0 0
    %1384 = vmatpush.bf16.msra.mxu0 0
    %1385 = vmatpush.bf16.msra.mxu0 0
    %1386 = vmatpush.bf16.msra.mxu0 0
    %1387 = vmatpush.bf16.msra.mxu0 0
    %1388 = vmatpush.bf16.msra.mxu0 0
    %1389 = vmatpush.bf16.msra.mxu0 %v961
    %1390 = vmatpush.bf16.msra.mxu0 %v960
    %1391 = vmatmul.bf16.gmra.mxu0 %v1381
    %v1392 = vpop.f32.mrf.mxu0
    %v1393 = vadd.f32 0.0, %v1392
    %v1394 = vpop.f32.mrf.mxu0
    %1395 = vdwg.mxu0
    %v1396 = vadd.f32 %v1375, %v1393
    %v1397 = vxor.u32 %v1396, 2147483648
    %v1398 = vmul.f32 %v1397, 1.442695
    %v1399 = vpow.pop %v1398
    %v1400 = vadd.f32 %v1399, 1.0
    %v1401 = vrcp.pop %v1400
    %v1402 = vmul.f32 %v1400, %v1401
    %v1403 = vsub.f32 1.0, %v1402
    %v1404 = vmul.f32 %v1401, %v1403
    %v1405 = vadd.f32 %v1401, %v1404
    %vm1406 = vweird.f32 %v1400
    %vm1407 = vweird.f32 %v1401
    %vm1408 = vmor %vm1406, %vm1407
    %v1409 = vsel %vm1408, %v1401, %v1405
    %v1410 = vand.u32 2147483647, %v1400
    %vm1411 = vcmp.eq.f32.partialorder %v1410, 8.507059e+37
    %v1412 = vand.u32 %v1400, 2147483648
    %v1413 = vor.u32 1.1754944e-38, %v1412
    %v1414 = vsel %vm1411, %v1413, %v1409
    %v1415 = vmul.f32 1.0, %v1414
    %v1416 = vadd.f32 %v1393, %v1000
    %1418 = vrot.lane.b32.xlu0 %v1416, 64
    %v1419 = vpop.permute.xlu0 %1418
    %v1421 = vmul.f32 %v1415, %v1419
    %1423 = vrot.lane.b32.xlu0 %v1421, 64
    %v1424 = vpop.permute.xlu0 %1423
    %v1426 = vadd.f32 %v1375, %v1424
    %v1427 = vtanh.pop %v1426
    %v1428 = vsub.f32 %v1369, %v1427
    %1430 = vrot.lane.b32.xlu0 %v1428, 96
    %v1431 = vpop.permute.xlu0 %1430
    %v1433 = vmul.f32 %v1415, %v1431
    %1435 = vrot.lane.b32.xlu0 %v1433, 32
    %v1436 = vpop.permute.xlu0 %1435
    %v1438 = vadd.f32 %v1427, %v1436
    %1440 = vrot.lane.b32.xlu0 %v1438, 64
    %v1441 = vpop.permute.xlu0 %1440
    %1443 = vst.msk [vmem:[%s784] sm:$0xff] %vm290, %v1441
    %v1444 = vld [vmem:[%s786] sm:$0xff]
    %v1445 = vpack.c.bf16 %v1438, %v1438
    %1447 = vrot.lane.b32.xlu0 %v1445, 64
    %v1448 = vpop.permute.xlu0 %1447
    %v1450 = vsel %vm290, %v1448, 0
    %1452 = vmatpush.bf16.msra.mxu0 0
    %1453 = vmatpush.bf16.msra.mxu0 0
    %1454 = vmatpush.bf16.msra.mxu0 0
    %1455 = vmatpush.bf16.msra.mxu0 0
    %1456 = vmatpush.bf16.msra.mxu0 0
    %1457 = vmatpush.bf16.msra.mxu0 0
    %1458 = vmatpush.bf16.msra.mxu0 %v961
    %1459 = vmatpush.bf16.msra.mxu0 %v960
    %1460 = vmatmul.bf16.gmra.mxu0 %v1450
    %v1461 = vpop.f32.mrf.mxu0
    %v1462 = vadd.f32 0.0, %v1461
    %v1463 = vpop.f32.mrf.mxu0
    %1464 = vdwg.mxu0
    %v1465 = vadd.f32 %v1444, %v1462
    %v1466 = vxor.u32 %v1465, 2147483648
    %v1467 = vmul.f32 %v1466, 1.442695
    %v1468 = vpow.pop %v1467
    %v1469 = vadd.f32 %v1468, 1.0
    %v1470 = vrcp.pop %v1469
    %v1471 = vmul.f32 %v1469, %v1470
    %v1472 = vsub.f32 1.0, %v1471
    %v1473 = vmul.f32 %v1470, %v1472
    %v1474 = vadd.f32 %v1470, %v1473
    %vm1475 = vweird.f32 %v1469
    %vm1476 = vweird.f32 %v1470
    %vm1477 = vmor %vm1475, %vm1476
    %v1478 = vsel %vm1477, %v1470, %v1474
    %v1479 = vand.u32 2147483647, %v1469
    %vm1480 = vcmp.eq.f32.partialorder %v1479, 8.507059e+37
    %v1481 = vand.u32 %v1469, 2147483648
    %v1482 = vor.u32 1.1754944e-38, %v1481
    %v1483 = vsel %vm1480, %v1482, %v1478
    %v1484 = vmul.f32 1.0, %v1483
    %v1485 = vadd.f32 %v1462, %v1000
    %1487 = vrot.lane.b32.xlu0 %v1485, 64
    %v1488 = vpop.permute.xlu0 %1487
    %v1490 = vmul.f32 %v1484, %v1488
    %1492 = vrot.lane.b32.xlu0 %v1490, 64
    %v1493 = vpop.permute.xlu0 %1492
    %v1495 = vadd.f32 %v1444, %v1493
    %v1496 = vtanh.pop %v1495
    %v1497 = vsub.f32 %v1438, %v1496
    %1499 = vrot.lane.b32.xlu0 %v1497, 96
    %v1500 = vpop.permute.xlu0 %1499
    %v1502 = vmul.f32 %v1484, %v1500
    %1504 = vrot.lane.b32.xlu0 %v1502, 32
    %v1505 = vpop.permute.xlu0 %1504
    %v1507 = vadd.f32 %v1496, %v1505
    %1509 = vrot.lane.b32.xlu0 %v1507, 64
    %v1510 = vpop.permute.xlu0 %1509
    %1512 = vst.msk [vmem:[%s855] sm:$0xff] %vm290, %v1510
    %v1513 = vld [vmem:[#allocation3] sm:$0xff]
    %v1514 = vld [vmem:[#allocation3 + $0x8] sm:$0xff]
    %v1515 = vld [vmem:[#allocation3 + $0x10] sm:$0xff]
    %v1516 = vld [vmem:[#allocation3 + $0x18] sm:$0xff]
    %v1517 = vld [vmem:[#allocation3 + $0x20] sm:$0xff]
    %v1518 = vld [vmem:[#allocation3 + $0x28] sm:$0xff]
    %v1519 = vld [vmem:[#allocation3 + $0x30] sm:$0xff]
    %v1520 = vld [vmem:[#allocation3 + $0x38] sm:$0xff]
    %v1521 = vsel %vm290, %v1513, 0.0
    %v1522 = vrot.slane %v1521, 4
    %v1523 = vadd.f32 %v1521, %v1522
    %v1524 = vrot.slane %v1523, 2
    %v1525 = vadd.f32 %v1523, %v1524
    %v1526 = vrot.slane %v1525, 1
    %v1527 = vadd.f32 %v1525, %v1526
    %v1528 = vsel %vm290, %v1514, 0.0
    %v1529 = vrot.slane %v1528, 4
    %v1530 = vadd.f32 %v1528, %v1529
    %v1531 = vrot.slane %v1530, 2
    %v1532 = vadd.f32 %v1530, %v1531
    %v1533 = vrot.slane %v1532, 1
    %v1534 = vadd.f32 %v1532, %v1533
    %v1535 = vsel %vm290, %v1515, 0.0
    %v1536 = vrot.slane %v1535, 4
    %v1537 = vadd.f32 %v1535, %v1536
    %v1538 = vrot.slane %v1537, 2
    %v1539 = vadd.f32 %v1537, %v1538
    %v1540 = vrot.slane %v1539, 1
    %v1541 = vadd.f32 %v1539, %v1540
    %v1542 = vsel %vm290, %v1516, 0.0
    %v1543 = vrot.slane %v1542, 4
    %v1544 = vadd.f32 %v1542, %v1543
    %v1545 = vrot.slane %v1544, 2
    %v1546 = vadd.f32 %v1544, %v1545
    %v1547 = vrot.slane %v1546, 1
    %v1548 = vadd.f32 %v1546, %v1547
    %v1549 = vsel %vm290, %v1517, 0.0
    %v1550 = vrot.slane %v1549, 4
    %v1551 = vadd.f32 %v1549, %v1550
    %v1552 = vrot.slane %v1551, 2
    %v1553 = vadd.f32 %v1551, %v1552
    %v1554 = vrot.slane %v1553, 1
    %v1555 = vadd.f32 %v1553, %v1554
    %v1556 = vsel %vm290, %v1518, 0.0
    %v1557 = vrot.slane %v1556, 4
    %v1558 = vadd.f32 %v1556, %v1557
    %v1559 = vrot.slane %v1558, 2
    %v1560 = vadd.f32 %v1558, %v1559
    %v1561 = vrot.slane %v1560, 1
    %v1562 = vadd.f32 %v1560, %v1561
    %v1563 = vsel %vm290, %v1519, 0.0
    %v1564 = vrot.slane %v1563, 4
    %v1565 = vadd.f32 %v1563, %v1564
    %v1566 = vrot.slane %v1565, 2
    %v1567 = vadd.f32 %v1565, %v1566
    %v1568 = vrot.slane %v1567, 1
    %v1569 = vadd.f32 %v1567, %v1568
    %v1570 = vsel %vm290, %v1520, 0.0
    %v1571 = vrot.slane %v1570, 4
    %v1572 = vadd.f32 %v1570, %v1571
    %v1573 = vrot.slane %v1572, 2
    %v1574 = vadd.f32 %v1572, %v1573
    %v1575 = vrot.slane %v1574, 1
    %v1576 = vadd.f32 %v1574, %v1575
    %v1577 = vrcp.pop 8.0
    %v1578 = vmul.f32 8.0, %v1577
    %v1579 = vsub.f32 1.0, %v1578
    %v1580 = vmul.f32 %v1577, %v1579
    %v1581 = vadd.f32 %v1577, %v1580
    %vm1582 = vweird.f32 %v1577
    %v1583 = vsel %vm1582, %v1577, %v1581
    %v1584 = vmul.f32 %v1527, %v1583
    %v1585 = vmul.f32 %v1534, %v1583
    %v1586 = vmul.f32 %v1541, %v1583
    %v1587 = vmul.f32 %v1548, %v1583
    %v1588 = vmul.f32 %v1555, %v1583
    %v1589 = vmul.f32 %v1562, %v1583
    %v1590 = vmul.f32 %v1569, %v1583
    %v1591 = vmul.f32 %v1576, %v1583
    %vm1600 = vcmask 1041409
    %v1601 = vsel %vm1600, %v1585, %v1584
    %vm1602 = vcmask 1042434
    %v1603 = vsel %vm1602, %v1586, %v1601
    %vm1604 = vcmask 1043459
    %v1605 = vsel %vm1604, %v1587, %v1603
    %vm1606 = vcmask 1044484
    %v1607 = vsel %vm1606, %v1588, %v1605
    %vm1608 = vcmask 1045509
    %v1609 = vsel %vm1608, %v1589, %v1607
    %vm1610 = vcmask 1046534
    %v1611 = vsel %vm1610, %v1590, %v1609
    %vm1612 = vcmask 1047559
    %v1613 = vsel %vm1612, %v1591, %v1611
    %1615 = vst.msk [vmem:[#allocation13] sm:$0xff] %vm290, %v1613
    // Predicated region
    $region58: #{tpu_custom_call.1} parent=1 // pred_check
      _
    $region59: #{tpu_custom_call.1} parent=1 // pred_check_branch
      %1617 = sbr.rel (0) target = $region61
    $region60: #{tpu_custom_call.1} parent=1 // pred_region
      %1619 = vsyncadd [#allocation6], 0
      %s1621 = sshll.u32 [#allocation13], 4
      %s1622 = int_to_ptr.vmem [resolvable:$true] %s1621
      %s1623 = sshll.u32 %s9, 4
      %s1624 = int_to_ptr.hbm [resolvable:$true] %s1623
      %1626 = dma.vmem_to_hbm [thread:$0]  %s1622, 128, %s1624, [#allocation6]
    $region61: #{tpu_custom_call.1} parent=1 // pred_fallthru
      _
    // Predicated region
    $region62: #{tpu_custom_call.1} parent=1 // pred_check
      _
    $region63: #{tpu_custom_call.1} parent=1 // pred_check_branch
      %1628 = sbr.rel (0) target = $region65
    $region64: #{tpu_custom_call.1} parent=1 // pred_region
      %1630 = dma.done [#allocation6], 128
    $region65: #{tpu_custom_call.1} parent=1 // pred_fallthru
      _
    %1631 = vsyncpa [#allocation5], 1
    %1632 = vsyncpa [#allocation8], 1
    %1633 = vsyncpa [#allocation11], 1
    %1634 = vsyncpa [#allocation6], 1

</llo_original>
